<compile_context>
chip_gen: v7x
topology: tpu7x:2x2x1
jax: 0.10.0
libtpu: 0.0.40
codegen_flags: <defaults>
</compile_context>

<pallas_src>
import functools

import jax
import jax.numpy as jnp
from jax import lax
from jax.experimental import pallas as pl
from jax.experimental.pallas import tpu as pltpu


def _multibox_loss_kernel(loc_ref, conf_ref, pri_ref, gtr_ref, gt8_ref, out_ref,
                          *, threshold, neg_pos_ratio, variance,
                          num_real_priors, mining_iters=30):
    # loc_ref  : (1, 4, Pp)  predicted offsets, priors on lanes
    # conf_ref : (1, C, Pp)  class logits, classes on sublanes
    # pri_ref  : (4, Pp)     priors (center-size), shared across the batch grid
    # gtr_ref  : (1, G, 4)   gt boxes, point form, one row per gt
    # gt8_ref  : (1, 8, G)   rows [x1, y1, x2, y2, label+1, 0, 0, 0]
    # out_ref  : (1, 8, 128) partial sums in lanes 0..3 of row 0
    _, _, Pp = loc_ref.shape
    C = conf_ref.shape[1]
    G = gtr_ref.shape[1]
    var0, var1 = float(variance[0]), float(variance[1])
    thr = float(threshold)
    npr = float(neg_pos_ratio)
    Pr = int(num_real_priors)

    # ---- priors in point form, all (1, Pp) lane-dense rows
    pri = pri_ref[...]
    p_cx = pri[0:1, :]
    p_cy = pri[1:2, :]
    p_w = pri[2:3, :]
    p_h = pri[3:4, :]
    px1 = p_cx - 0.5 * p_w
    py1 = p_cy - 0.5 * p_h
    px2 = p_cx + 0.5 * p_w
    py2 = p_cy + 0.5 * p_h
    area_p = (px2 - px1) * (py2 - py1)                        # (1, Pp)

    # ---- gt boxes as (G, 1) columns
    gtr = gtr_ref[0]                                          # (G, 4)
    gx1 = gtr[:, 0:1]
    gy1 = gtr[:, 1:2]
    gx2 = gtr[:, 2:3]
    gy2 = gtr[:, 3:4]
    area_g = (gx2 - gx1) * (gy2 - gy1)                        # (G, 1)

    # ---- jaccard overlap, gts on sublanes / priors on lanes: (G, Pp)
    ix1 = jnp.maximum(px1, gx1)
    iy1 = jnp.maximum(py1, gy1)
    ix2 = jnp.minimum(px2, gx2)
    iy2 = jnp.minimum(py2, gy2)
    iw = jnp.maximum(ix2 - ix1, 0.0)
    ih = jnp.maximum(iy2 - iy1, 0.0)
    inter = iw * ih
    union = area_p + area_g - inter
    overlaps = inter / (union + 1e-12)                        # (G, Pp)

    g_iota = lax.broadcasted_iota(jnp.int32, (G, Pp), 0).astype(jnp.float32)
    p_iota = lax.broadcasted_iota(jnp.int32, (G, Pp), 1).astype(jnp.float32)

    # best gt per prior (first-index tie break == torch argmax)
    bto = jnp.max(overlaps, axis=0, keepdims=True)                        # (1,Pp)
    bti = jnp.min(jnp.where(overlaps == bto, g_iota, float(G)),
                  axis=0, keepdims=True)                                  # (1,Pp)
    # best prior per gt
    bpo = jnp.max(overlaps, axis=1, keepdims=True)                        # (G,1)
    bpi = jnp.min(jnp.where(overlaps == bpo, p_iota, float(Pp)),
                  axis=1, keepdims=True)                                  # (G,1)
    # force-match: each gt keeps its best prior (later gt wins ties)
    bp_onehot = p_iota == bpi                                             # (G,Pp)
    force_any = jnp.max(bp_onehot.astype(jnp.float32), axis=0,
                        keepdims=True) > 0.0                              # (1,Pp)
    forced_idx = jnp.max(jnp.where(bp_onehot, g_iota, -1.0), axis=0,
                         keepdims=True)                                   # (1,Pp)
    bto = jnp.where(force_any, 2.0, bto)
    bti = jnp.where(force_any, forced_idx, bti)

    onehot = (g_iota == bti).astype(jnp.float32)                          # (G,Pp)

    # ---- gather matched gt box + label with one MXU matmul: (8,G)@(G,Pp)
    matched = jnp.dot(gt8_ref[0], onehot,
                      preferred_element_type=jnp.float32,
                      precision=lax.Precision.HIGHEST)                    # (8,Pp)
    mx1 = matched[0:1, :]
    my1 = matched[1:2, :]
    mx2 = matched[2:3, :]
    my2 = matched[3:4, :]

    # confidence targets (label + 1, background 0 below threshold)
    conf_t = jnp.where(bto < thr, 0.0, matched[4:5, :])                   # (1,Pp)
    pos = conf_t > 0.0
    num_pos_b = jnp.sum(pos.astype(jnp.float32))

    # ---- localization targets (encode with variances) + smooth-L1 on positives
    g_cx = ((mx1 + mx2) * 0.5 - p_cx) / (var0 * p_w)
    g_cy = ((my1 + my2) * 0.5 - p_cy) / (var0 * p_h)
    g_w = jnp.log((mx2 - mx1) / p_w) / var1
    g_h = jnp.log((my2 - my1) / p_h) / var1

    loc_t = jnp.concatenate([g_cx, g_cy, g_w, g_h], axis=0)               # (4,Pp)
    d = loc_ref[0] - loc_t                                                # (4,Pp)
    a = jnp.abs(d)
    sl1 = jnp.sum(jnp.where(a < 1.0, 0.5 * d * d, a - 0.5),
                  axis=0, keepdims=True)                                  # (1,Pp)

    # ---- per-prior softmax cross-entropy (classes on sublanes)
    conf = conf_ref[0]                                                    # (C,Pp)
    cmax = jnp.max(conf, axis=0, keepdims=True)
    lse = cmax + jnp.log(jnp.sum(jnp.exp(conf - cmax), axis=0, keepdims=True))
    cls_idx = (conf_t + 0.5).astype(jnp.int32)                            # (1,Pp)
    c_iota = lax.broadcasted_iota(jnp.int32, (C, Pp), 0)
    tgt = jnp.sum(jnp.where(c_iota == cls_idx, conf, 0.0),
                  axis=0, keepdims=True)
    loss_c = lse - tgt                                                    # (1,Pp)

    # ---- hard negative mining: sum of top-k negative losses via bisection.
    neg = jnp.logical_not(pos)
    if Pp > Pr:   # mask padded priors out of mining (static branch)
        lane = lax.broadcasted_iota(jnp.int32, (1, Pp), 1)
        neg = jnp.logical_and(neg, lane < Pr)
    v = jnp.where(neg, loss_c, 0.0)                                       # >= 0
    k = jnp.minimum(npr * num_pos_b, float(Pr - 1))

    lo = jnp.float32(-1.0)
    hi = jnp.max(v)
    for _ in range(mining_iters):
        mid = 0.5 * (lo + hi)
        cnt = jnp.sum((v > mid).astype(jnp.float32))
        go_up = cnt > k
        lo = jnp.where(go_up, mid, lo)
        hi = jnp.where(go_up, hi, mid)
    sel = v > hi                                   # count(v > hi) <= k by invariant
    cnt_hi = jnp.sum(sel.astype(jnp.float32))

    # ---- fuse the three loss partial sums into a single lane reduction
    stack3 = jnp.concatenate([
        jnp.where(pos, sl1, 0.0),        # smooth-L1 on positives
        jnp.where(pos, loss_c, 0.0),     # CE on positives
        jnp.where(sel, v, 0.0),          # CE on mined negatives (strictly > hi)
    ], axis=0)                                                            # (3,Pp)
    sums3 = jnp.sum(stack3, axis=1, keepdims=True)                        # (3,1)
    loss_l_b = sums3[0:1, 0:1]
    loss_c_pos_b = sums3[1:2, 0:1]
    loss_c_neg_b = sums3[2:3, 0:1] + jnp.maximum(k - cnt_hi, 0.0) * hi

    # ---- write per-batch partial sums (lanes 0..3 of sublane 0)
    lane8 = lax.broadcasted_iota(jnp.int32, (8, 128), 1)
    res = (jnp.where(lane8 == 0, loss_l_b, 0.0)
           + jnp.where(lane8 == 1, loss_c_pos_b, 0.0)
           + jnp.where(lane8 == 2, loss_c_neg_b, 0.0)
           + jnp.where(lane8 == 3, num_pos_b, 0.0))
    out_ref[0] = res


def multibox_loss_pallas(loc_data, conf_data, priors, gt_boxes, gt_labels,
                         threshold=0.5, neg_pos_ratio=3, variance=(0.1, 0.2)):
    B, P, _ = loc_data.shape
    C = conf_data.shape[-1]
    G = gt_boxes.shape[1]

    # ---- layout glue only: pad the prior axis to a multiple of 128 and flip
    #      per-prior data so priors map to the (dense) lane axis.
    P_pad = max(128, ((P + 127) // 128) * 128)
    pp = P_pad - P
    loc_p = jnp.pad(loc_data.astype(jnp.float32), ((0, 0), (0, pp), (0, 0)))
    conf_p = jnp.pad(conf_data.astype(jnp.float32), ((0, 0), (0, pp), (0, 0)))
    pri_p = jnp.pad(priors.astype(jnp.float32), ((0, pp), (0, 0)))

    loc_t = jnp.transpose(loc_p, (0, 2, 1))                   # (B, 4, P_pad)
    conf_cp = jnp.transpose(conf_p, (0, 2, 1))                # (B, C, P_pad)
    pri_t = jnp.transpose(pri_p, (1, 0))                      # (4, P_pad)
    gt_r = gt_boxes.astype(jnp.float32)                       # (B, G, 4)
    gt8 = jnp.concatenate(
        [jnp.transpose(gt_r, (0, 2, 1)),
         (gt_labels.astype(jnp.float32) + 1.0)[:, None, :],
         jnp.zeros((B, 3, G), jnp.float32)], axis=1)          # (B, 8, G)

    kernel = functools.partial(
        _multibox_loss_kernel, threshold=threshold,
        neg_pos_ratio=neg_pos_ratio, variance=variance, num_real_priors=P)

    part_out = pl.pallas_call(
        kernel,
        out_shape=jax.ShapeDtypeStruct((B, 8, 128), jnp.float32),
        grid_spec=pltpu.PrefetchScalarGridSpec(
            num_scalar_prefetch=0,
            grid=(B,),
            in_specs=[
                pl.BlockSpec((1, 4, P_pad), lambda b: (b, 0, 0)),   # loc
                pl.BlockSpec((1, C, P_pad), lambda b: (b, 0, 0)),   # conf
                pl.BlockSpec((4, P_pad), lambda b: (0, 0)),         # priors (shared)
                pl.BlockSpec((1, G, 4), lambda b: (b, 0, 0)),       # gt rows
                pl.BlockSpec((1, 8, G), lambda b: (b, 0, 0)),       # gt matmul LHS
            ],
            out_specs=pl.BlockSpec((1, 8, 128), lambda b: (b, 0, 0)),
        ),
        compiler_params=pltpu.CompilerParams(
            dimension_semantics=("parallel",),
            vmem_limit_bytes=32 * 1024 * 1024),
    )(loc_t, conf_cp, pri_t, gt_r, gt8)

    parts = part_out[:, 0, :4]                                 # (B, 4)
    n = jnp.sum(parts[:, 3])
    loss_l = jnp.sum(parts[:, 0]) / n
    loss_c = (jnp.sum(parts[:, 1]) + jnp.sum(parts[:, 2])) / n
    return loss_l, loss_c


def multibox_loss_reference(loc, conf, priors, gt_boxes, gt_labels,
                            threshold=0.5, neg_pos_ratio=3, variance=(0.1, 0.2)):
    """Pure-JAX mirror of the torch forward (sort-based hard negative mining)."""
    B, P, C = conf.shape
    G = gt_boxes.shape[1]

    def match_one(truths, labels):
        pr_pt = jnp.concatenate([priors[:, :2] - priors[:, 2:] / 2,
                                 priors[:, :2] + priors[:, 2:] / 2], axis=1)
        max_xy = jnp.minimum(truths[:, None, 2:], pr_pt[None, :, 2:])
        min_xy = jnp.maximum(truths[:, None, :2], pr_pt[None, :, :2])
        inter = jnp.clip(max_xy - min_xy, 0.0)
        inter = inter[..., 0] * inter[..., 1]
        area_a = ((truths[:, 2] - truths[:, 0]) *
                  (truths[:, 3] - truths[:, 1]))[:, None]
        area_b = ((pr_pt[:, 2] - pr_pt[:, 0]) *
                  (pr_pt[:, 3] - pr_pt[:, 1]))[None, :]
        overlaps = inter / (area_a + area_b - inter)
        best_prior_idx = jnp.argmax(overlaps, axis=1)
        best_truth_overlap = jnp.max(overlaps, axis=0)
        best_truth_idx = jnp.argmax(overlaps, axis=0)
        best_truth_overlap = best_truth_overlap.at[best_prior_idx].set(2.0)
        for j in range(G):
            best_truth_idx = best_truth_idx.at[best_prior_idx[j]].set(j)
        matches = truths[best_truth_idx]
        conf_t = labels[best_truth_idx] + 1
        conf_t = jnp.where(best_truth_overlap < threshold, 0, conf_t)
        g_cxcy = (matches[:, :2] + matches[:, 2:]) / 2 - priors[:, :2]
        g_cxcy = g_cxcy / (variance[0] * priors[:, 2:])
        g_wh = jnp.log((matches[:, 2:] - matches[:, :2]) / priors[:, 2:]) / variance[1]
        return jnp.concatenate([g_cxcy, g_wh], axis=1), conf_t

    loc_t, conf_t = jax.vmap(match_one)(gt_boxes, gt_labels)
    pos = conf_t > 0
    num_pos = pos.sum(axis=1, keepdims=True)
    d = loc - loc_t
    sl1 = jnp.where(jnp.abs(d) < 1.0, 0.5 * d * d, jnp.abs(d) - 0.5)
    loss_l = jnp.sum(jnp.where(pos[..., None], sl1, 0.0))
    lse = jax.nn.logsumexp(conf, axis=-1)
    tgt = jnp.take_along_axis(conf, conf_t[..., None], axis=-1)[..., 0]
    loss_c_all = lse - tgt
    loss_c_pos = jnp.sum(jnp.where(pos, loss_c_all, 0.0))
    num_neg = jnp.minimum(neg_pos_ratio * num_pos, P - 1)
    lcn = jnp.where(pos, 0.0, loss_c_all)
    lcn_sorted = -jnp.sort(-lcn, axis=1)
    sel = jnp.arange(P)[None, :] < num_neg
    loss_c_neg = jnp.sum(lcn_sorted * sel)
    N = num_pos.sum()
    return loss_l / N, (loss_c_pos + loss_c_neg) / N


if __name__ == "__main__":
    B, P, C, G = 2, 128, 8, 8          # batch, num_priors, num_classes, num_objs
    threshold, neg_pos_ratio, variance = 0.5, 3, (0.1, 0.2)

    key = jax.random.PRNGKey(0)
    k1, k2, k3, k4, k5, k6, k7 = jax.random.split(key, 7)

    # priors in center-size form
    ctr = jax.random.uniform(k1, (P, 2), minval=0.15, maxval=0.85)
    sz = jax.random.uniform(k2, (P, 2), minval=0.05, maxval=0.30)
    priors = jnp.concatenate([ctr, sz], axis=1).astype(jnp.float32)

    # valid gt boxes (point form) and labels in [0, C-2]
    g_ctr = jax.random.uniform(k3, (B, G, 2), minval=0.2, maxval=0.8)
    g_sz = jax.random.uniform(k4, (B, G, 2), minval=0.05, maxval=0.3)
    gt_boxes = jnp.concatenate([g_ctr - g_sz / 2, g_ctr + g_sz / 2],
                               axis=-1).astype(jnp.float32)
    gt_labels = jax.random.randint(k5, (B, G), 0, C - 1).astype(jnp.int32)

    # network predictions
    loc_data = (0.1 * jax.random.normal(k6, (B, P, 4))).astype(jnp.float32)
    conf_data = jax.random.normal(k7, (B, P, C)).astype(jnp.float32)

    run = jax.jit(functools.partial(multibox_loss_pallas,
                                    threshold=threshold,
                                    neg_pos_ratio=neg_pos_ratio,
                                    variance=variance))
    loss_l, loss_c = run(loc_data, conf_data, priors, gt_boxes, gt_labels)
    jax.block_until_ready((loss_l, loss_c))

    ref_l, ref_c = multibox_loss_reference(
        loc_data, conf_data, priors, gt_boxes, gt_labels,
        threshold=threshold, neg_pos_ratio=neg_pos_ratio, variance=variance)
    assert jnp.allclose(loss_l, ref_l, rtol=5e-3, atol=5e-3), (loss_l, ref_l)
    assert jnp.allclose(loss_c, ref_c, rtol=5e-3, atol=5e-3), (loss_c, ref_c)

    print("KERNEL_OK")
</pallas_src>

<mosaic_0001>
module attributes {stable_mosaic.version = 11 : i64} {
  func.func @_multibox_loss_kernel(%arg0: i32, %arg1: memref<1x4x128xf32, #tpu.memory_space<vmem>>, %arg2: memref<1x8x128xf32, #tpu.memory_space<vmem>>, %arg3: memref<4x128xf32, #tpu.memory_space<vmem>>, %arg4: memref<1x8x4xf32, #tpu.memory_space<vmem>>, %arg5: memref<1x8x8xf32, #tpu.memory_space<vmem>>, %arg6: memref<1x8x128xf32, #tpu.memory_space<vmem>>) attributes {dimension_semantics = [#tpu.dimension_semantics<parallel>], iteration_bounds = array<i64: 2>, scalar_prefetch = 0 : i64, scratch_operands = 0 : i64, tpu.core_type = #tpu.core_type<tc>, window_params = [{transform_indices = @transform_0, window_bounds = array<i64: 1, 4, 128>}, {transform_indices = @transform_1, window_bounds = array<i64: 1, 8, 128>}, {pipeline_mode = #tpu.pipeline_mode<synchronous>, transform_indices = @transform_2, window_bounds = array<i64: 4, 128>}, {transform_indices = @transform_3, window_bounds = array<i64: 1, 8, 4>}, {transform_indices = @transform_4, window_bounds = array<i64: 1, 8, 8>}, {transform_indices = @transform_5, window_bounds = array<i64: 1, 8, 128>}]} {
    %c0 = arith.constant 0 : index
    %c0_0 = arith.constant 0 : index
    %0 = vector.load %arg3[%c0, %c0_0] : memref<4x128xf32, #tpu.memory_space<vmem>>, vector<4x128xf32>
    %1 = vector.extract_strided_slice %0 {offsets = [0, 0], sizes = [1, 128], strides = [1, 1]} : vector<4x128xf32> to vector<1x128xf32>
    %2 = vector.extract_strided_slice %0 {offsets = [1, 0], sizes = [1, 128], strides = [1, 1]} : vector<4x128xf32> to vector<1x128xf32>
    %3 = vector.extract_strided_slice %0 {offsets = [2, 0], sizes = [1, 128], strides = [1, 1]} : vector<4x128xf32> to vector<1x128xf32>
    %4 = vector.extract_strided_slice %0 {offsets = [3, 0], sizes = [1, 128], strides = [1, 1]} : vector<4x128xf32> to vector<1x128xf32>
    %cst = arith.constant 5.000000e-01 : f32
    %5 = vector.broadcast %cst : f32 to vector<1x128xf32>
    %6 = arith.mulf %5, %3 : vector<1x128xf32>
    %7 = arith.subf %1, %6 : vector<1x128xf32>
    %cst_1 = arith.constant 5.000000e-01 : f32
    %8 = vector.broadcast %cst_1 : f32 to vector<1x128xf32>
    %9 = arith.mulf %8, %4 : vector<1x128xf32>
    %10 = arith.subf %2, %9 : vector<1x128xf32>
    %cst_2 = arith.constant 5.000000e-01 : f32
    %11 = vector.broadcast %cst_2 : f32 to vector<1x128xf32>
    %12 = arith.mulf %11, %3 : vector<1x128xf32>
    %13 = arith.addf %1, %12 : vector<1x128xf32>
    %cst_3 = arith.constant 5.000000e-01 : f32
    %14 = vector.broadcast %cst_3 : f32 to vector<1x128xf32>
    %15 = arith.mulf %14, %4 : vector<1x128xf32>
    %16 = arith.addf %2, %15 : vector<1x128xf32>
    %17 = arith.subf %13, %7 : vector<1x128xf32>
    %18 = arith.subf %16, %10 : vector<1x128xf32>
    %19 = arith.mulf %17, %18 : vector<1x128xf32>
    %c0_4 = arith.constant 0 : index
    %c0_5 = arith.constant 0 : index
    %c0_6 = arith.constant 0 : index
    %20 = vector.load %arg4[%c0_4, %c0_5, %c0_6] : memref<1x8x4xf32, #tpu.memory_space<vmem>>, vector<1x8x4xf32>
    %21 = vector.shape_cast %20 : vector<1x8x4xf32> to vector<8x4xf32>
    %22 = vector.extract_strided_slice %21 {offsets = [0, 0], sizes = [8, 1], strides = [1, 1]} : vector<8x4xf32> to vector<8x1xf32>
    %23 = vector.extract_strided_slice %21 {offsets = [0, 1], sizes = [8, 1], strides = [1, 1]} : vector<8x4xf32> to vector<8x1xf32>
    %24 = vector.extract_strided_slice %21 {offsets = [0, 2], sizes = [8, 1], strides = [1, 1]} : vector<8x4xf32> to vector<8x1xf32>
    %25 = vector.extract_strided_slice %21 {offsets = [0, 3], sizes = [8, 1], strides = [1, 1]} : vector<8x4xf32> to vector<8x1xf32>
    %26 = arith.subf %24, %22 : vector<8x1xf32>
    %27 = arith.subf %25, %23 : vector<8x1xf32>
    %28 = arith.mulf %26, %27 : vector<8x1xf32>
    %29 = vector.broadcast %7 : vector<1x128xf32> to vector<8x128xf32>
    %30 = vector.broadcast %22 : vector<8x1xf32> to vector<8x128xf32>
    %31 = arith.maximumf %29, %30 : vector<8x128xf32>
    %32 = vector.broadcast %10 : vector<1x128xf32> to vector<8x128xf32>
    %33 = vector.broadcast %23 : vector<8x1xf32> to vector<8x128xf32>
    %34 = arith.maximumf %32, %33 : vector<8x128xf32>
    %35 = vector.broadcast %13 : vector<1x128xf32> to vector<8x128xf32>
    %36 = vector.broadcast %24 : vector<8x1xf32> to vector<8x128xf32>
    %37 = arith.minimumf %35, %36 : vector<8x128xf32>
    %38 = vector.broadcast %16 : vector<1x128xf32> to vector<8x128xf32>
    %39 = vector.broadcast %25 : vector<8x1xf32> to vector<8x128xf32>
    %40 = arith.minimumf %38, %39 : vector<8x128xf32>
    %41 = arith.subf %37, %31 : vector<8x128xf32>
    %cst_7 = arith.constant 0.000000e+00 : f32
    %42 = vector.broadcast %cst_7 : f32 to vector<8x128xf32>
    %43 = arith.maximumf %41, %42 : vector<8x128xf32>
    %44 = arith.subf %40, %34 : vector<8x128xf32>
    %cst_8 = arith.constant 0.000000e+00 : f32
    %45 = vector.broadcast %cst_8 : f32 to vector<8x128xf32>
    %46 = arith.maximumf %44, %45 : vector<8x128xf32>
    %47 = arith.mulf %43, %46 : vector<8x128xf32>
    %48 = vector.broadcast %19 : vector<1x128xf32> to vector<8x128xf32>
    %49 = vector.broadcast %28 : vector<8x1xf32> to vector<8x128xf32>
    %50 = arith.addf %48, %49 : vector<8x128xf32>
    %51 = arith.subf %50, %47 : vector<8x128xf32>
    %cst_9 = arith.constant 9.99999996E-13 : f32
    %52 = vector.broadcast %cst_9 : f32 to vector<8x128xf32>
    %53 = arith.addf %51, %52 : vector<8x128xf32>
    %54 = arith.divf %47, %53 : vector<8x128xf32>
    %55 = tpu.iota {dimensions = array<i32: 0>} : vector<8x128xi32>
    %56 = arith.sitofp %55 : vector<8x128xi32> to vector<8x128xf32>
    %57 = tpu.iota {dimensions = array<i32: 1>} : vector<8x128xi32>
    %58 = arith.sitofp %57 : vector<8x128xi32> to vector<8x128xf32>
    %cst_10 = arith.constant dense<0xFF800000> : vector<128xf32>
    %59 = vector.multi_reduction <maximumf>, %54, %cst_10 [0] : vector<8x128xf32> to vector<128xf32>
    %60 = vector.shape_cast %59 : vector<128xf32> to vector<1x128xf32>
    %61 = vector.broadcast %60 : vector<1x128xf32> to vector<8x128xf32>
    %62 = arith.cmpf oeq, %54, %61 : vector<8x128xf32>
    %cst_11 = arith.constant 8.000000e+00 : f32
    %63 = vector.broadcast %cst_11 : f32 to vector<8x128xf32>
    %64 = arith.select %62, %56, %63 : vector<8x128xi1>, vector<8x128xf32>
    %cst_12 = arith.constant dense<0x7F800000> : vector<128xf32>
    %65 = vector.multi_reduction <minimumf>, %64, %cst_12 [0] : vector<8x128xf32> to vector<128xf32>
    %66 = vector.shape_cast %65 : vector<128xf32> to vector<1x128xf32>
    %cst_13 = arith.constant dense<0xFF800000> : vector<8xf32>
    %67 = vector.multi_reduction <maximumf>, %54, %cst_13 [1] : vector<8x128xf32> to vector<8xf32>
    %68 = vector.shape_cast %67 : vector<8xf32> to vector<8x1xf32>
    %69 = vector.broadcast %68 : vector<8x1xf32> to vector<8x128xf32>
    %70 = arith.cmpf oeq, %54, %69 : vector<8x128xf32>
    %cst_14 = arith.constant 1.280000e+02 : f32
    %71 = vector.broadcast %cst_14 : f32 to vector<8x128xf32>
    %72 = arith.select %70, %58, %71 : vector<8x128xi1>, vector<8x128xf32>
    %cst_15 = arith.constant dense<0x7F800000> : vector<8xf32>
    %73 = vector.multi_reduction <minimumf>, %72, %cst_15 [1] : vector<8x128xf32> to vector<8xf32>
    %74 = vector.shape_cast %73 : vector<8xf32> to vector<8x1xf32>
    %75 = vector.broadcast %74 : vector<8x1xf32> to vector<8x128xf32>
    %76 = arith.cmpf oeq, %58, %75 : vector<8x128xf32>
    %77 = arith.extui %76 : vector<8x128xi1> to vector<8x128xi32>
    %78 = arith.sitofp %77 : vector<8x128xi32> to vector<8x128xf32>
    %cst_16 = arith.constant dense<0xFF800000> : vector<128xf32>
    %79 = vector.multi_reduction <maximumf>, %78, %cst_16 [0] : vector<8x128xf32> to vector<128xf32>
    %80 = vector.shape_cast %79 : vector<128xf32> to vector<1x128xf32>
    %cst_17 = arith.constant 0.000000e+00 : f32
    %81 = vector.broadcast %cst_17 : f32 to vector<1x128xf32>
    %82 = arith.cmpf ogt, %80, %81 : vector<1x128xf32>
    %cst_18 = arith.constant -1.000000e+00 : f32
    %83 = vector.broadcast %cst_18 : f32 to vector<8x128xf32>
    %84 = arith.select %76, %56, %83 : vector<8x128xi1>, vector<8x128xf32>
    %cst_19 = arith.constant dense<0xFF800000> : vector<128xf32>
    %85 = vector.multi_reduction <maximumf>, %84, %cst_19 [0] : vector<8x128xf32> to vector<128xf32>
    %86 = vector.shape_cast %85 : vector<128xf32> to vector<1x128xf32>
    %cst_20 = arith.constant 2.000000e+00 : f32
    %87 = vector.broadcast %cst_20 : f32 to vector<1x128xf32>
    %88 = arith.select %82, %87, %60 : vector<1x128xi1>, vector<1x128xf32>
    %89 = arith.select %82, %86, %66 : vector<1x128xi1>, vector<1x128xf32>
    %90 = vector.broadcast %89 : vector<1x128xf32> to vector<8x128xf32>
    %91 = arith.cmpf oeq, %56, %90 : vector<8x128xf32>
    %92 = arith.extui %91 : vector<8x128xi1> to vector<8x128xi32>
    %93 = arith.sitofp %92 : vector<8x128xi32> to vector<8x128xf32>
    %c0_21 = arith.constant 0 : index
    %c0_22 = arith.constant 0 : index
    %c0_23 = arith.constant 0 : index
    %94 = vector.load %arg5[%c0_21, %c0_22, %c0_23] : memref<1x8x8xf32, #tpu.memory_space<vmem>>, vector<1x8x8xf32>
    %95 = vector.shape_cast %94 : vector<1x8x8xf32> to vector<8x8xf32>
    %cst_24 = arith.constant dense<0.000000e+00> : vector<8x128xf32>
    %96 = tpu.matmul %95, %93, %cst_24 {dimension_numbers = #tpu.dot_dimension_numbers<[1], [0], [0], [1], [0, 0, 1, 1], [], []>, precision = #tpu.contract_precision<fp32>} : vector<8x8xf32>, vector<8x128xf32>, vector<8x128xf32> -> vector<8x128xf32>
    %97 = vector.extract_strided_slice %96 {offsets = [0, 0], sizes = [1, 128], strides = [1, 1]} : vector<8x128xf32> to vector<1x128xf32>
    %98 = vector.extract_strided_slice %96 {offsets = [1, 0], sizes = [1, 128], strides = [1, 1]} : vector<8x128xf32> to vector<1x128xf32>
    %99 = vector.extract_strided_slice %96 {offsets = [2, 0], sizes = [1, 128], strides = [1, 1]} : vector<8x128xf32> to vector<1x128xf32>
    %100 = vector.extract_strided_slice %96 {offsets = [3, 0], sizes = [1, 128], strides = [1, 1]} : vector<8x128xf32> to vector<1x128xf32>
    %cst_25 = arith.constant 5.000000e-01 : f32
    %101 = vector.broadcast %cst_25 : f32 to vector<1x128xf32>
    %102 = arith.cmpf olt, %88, %101 : vector<1x128xf32>
    %103 = vector.extract_strided_slice %96 {offsets = [4, 0], sizes = [1, 128], strides = [1, 1]} : vector<8x128xf32> to vector<1x128xf32>
    %cst_26 = arith.constant 0.000000e+00 : f32
    %104 = vector.broadcast %cst_26 : f32 to vector<1x128xf32>
    %105 = arith.select %102, %104, %103 : vector<1x128xi1>, vector<1x128xf32>
    %cst_27 = arith.constant 0.000000e+00 : f32
    %106 = vector.broadcast %cst_27 : f32 to vector<1x128xf32>
    %107 = arith.cmpf ogt, %105, %106 : vector<1x128xf32>
    %108 = arith.extui %107 : vector<1x128xi1> to vector<1x128xi32>
    %109 = arith.sitofp %108 : vector<1x128xi32> to vector<1x128xf32>
    %110 = vector.shape_cast %109 : vector<1x128xf32> to vector<1x1x128xf32>
    %cst_28 = arith.constant dense<0.000000e+00> : vector<1xf32>
    %111 = vector.multi_reduction <add>, %110, %cst_28 [1, 2] : vector<1x1x128xf32> to vector<1xf32>
    %112 = vector.shape_cast %111 : vector<1xf32> to vector<1x1x1xf32>
    %113 = vector.extract %112[0, 0, 0] : f32 from vector<1x1x1xf32>
    %114 = arith.addf %97, %99 : vector<1x128xf32>
    %cst_29 = arith.constant 5.000000e-01 : f32
    %115 = vector.broadcast %cst_29 : f32 to vector<1x128xf32>
    %116 = arith.mulf %114, %115 : vector<1x128xf32>
    %117 = arith.subf %116, %1 : vector<1x128xf32>
    %cst_30 = arith.constant 1.000000e-01 : f32
    %118 = vector.broadcast %cst_30 : f32 to vector<1x128xf32>
    %119 = arith.mulf %118, %3 : vector<1x128xf32>
    %120 = arith.divf %117, %119 : vector<1x128xf32>
    %121 = arith.addf %98, %100 : vector<1x128xf32>
    %cst_31 = arith.constant 5.000000e-01 : f32
    %122 = vector.broadcast %cst_31 : f32 to vector<1x128xf32>
    %123 = arith.mulf %121, %122 : vector<1x128xf32>
    %124 = arith.subf %123, %2 : vector<1x128xf32>
    %cst_32 = arith.constant 1.000000e-01 : f32
    %125 = vector.broadcast %cst_32 : f32 to vector<1x128xf32>
    %126 = arith.mulf %125, %4 : vector<1x128xf32>
    %127 = arith.divf %124, %126 : vector<1x128xf32>
    %128 = arith.subf %99, %97 : vector<1x128xf32>
    %129 = arith.divf %128, %3 : vector<1x128xf32>
    %130 = math.log %129 : vector<1x128xf32>
    %cst_33 = arith.constant 2.000000e-01 : f32
    %131 = vector.broadcast %cst_33 : f32 to vector<1x128xf32>
    %132 = arith.divf %130, %131 : vector<1x128xf32>
    %133 = arith.subf %100, %98 : vector<1x128xf32>
    %134 = arith.divf %133, %4 : vector<1x128xf32>
    %135 = math.log %134 : vector<1x128xf32>
    %cst_34 = arith.constant 2.000000e-01 : f32
    %136 = vector.broadcast %cst_34 : f32 to vector<1x128xf32>
    %137 = arith.divf %135, %136 : vector<1x128xf32>
    %138 = tpu.concatenate %120, %127, %132, %137 in 0 : vector<1x128xf32>, vector<1x128xf32>, vector<1x128xf32>, vector<1x128xf32> -> vector<4x128xf32>
    %c0_35 = arith.constant 0 : index
    %c0_36 = arith.constant 0 : index
    %c0_37 = arith.constant 0 : index
    %139 = vector.load %arg1[%c0_35, %c0_36, %c0_37] : memref<1x4x128xf32, #tpu.memory_space<vmem>>, vector<1x4x128xf32>
    %140 = vector.shape_cast %139 : vector<1x4x128xf32> to vector<4x128xf32>
    %141 = arith.subf %140, %138 : vector<4x128xf32>
    %142 = math.absf %141 : vector<4x128xf32>
    %cst_38 = arith.constant 1.000000e+00 : f32
    %143 = vector.broadcast %cst_38 : f32 to vector<4x128xf32>
    %144 = arith.cmpf olt, %142, %143 : vector<4x128xf32>
    %cst_39 = arith.constant 5.000000e-01 : f32
    %145 = vector.broadcast %cst_39 : f32 to vector<4x128xf32>
    %146 = arith.mulf %145, %141 : vector<4x128xf32>
    %147 = arith.mulf %146, %141 : vector<4x128xf32>
    %cst_40 = arith.constant 5.000000e-01 : f32
    %148 = vector.broadcast %cst_40 : f32 to vector<4x128xf32>
    %149 = arith.subf %142, %148 : vector<4x128xf32>
    %150 = arith.select %144, %147, %149 : vector<4x128xi1>, vector<4x128xf32>
    %cst_41 = arith.constant dense<0.000000e+00> : vector<128xf32>
    %151 = vector.multi_reduction <add>, %150, %cst_41 [0] : vector<4x128xf32> to vector<128xf32>
    %152 = vector.shape_cast %151 : vector<128xf32> to vector<1x128xf32>
    %c0_42 = arith.constant 0 : index
    %c0_43 = arith.constant 0 : index
    %c0_44 = arith.constant 0 : index
    %153 = vector.load %arg2[%c0_42, %c0_43, %c0_44] : memref<1x8x128xf32, #tpu.memory_space<vmem>>, vector<1x8x128xf32>
    %154 = vector.shape_cast %153 : vector<1x8x128xf32> to vector<8x128xf32>
    %cst_45 = arith.constant dense<0xFF800000> : vector<128xf32>
    %155 = vector.multi_reduction <maximumf>, %154, %cst_45 [0] : vector<8x128xf32> to vector<128xf32>
    %156 = vector.shape_cast %155 : vector<128xf32> to vector<1x128xf32>
    %157 = vector.broadcast %156 : vector<1x128xf32> to vector<8x128xf32>
    %158 = arith.subf %154, %157 : vector<8x128xf32>
    %159 = math.exp %158 : vector<8x128xf32>
    %cst_46 = arith.constant dense<0.000000e+00> : vector<128xf32>
    %160 = vector.multi_reduction <add>, %159, %cst_46 [0] : vector<8x128xf32> to vector<128xf32>
    %161 = vector.shape_cast %160 : vector<128xf32> to vector<1x128xf32>
    %162 = math.log %161 : vector<1x128xf32>
    %163 = arith.addf %156, %162 : vector<1x128xf32>
    %cst_47 = arith.constant 5.000000e-01 : f32
    %164 = vector.broadcast %cst_47 : f32 to vector<1x128xf32>
    %165 = arith.addf %105, %164 : vector<1x128xf32>
    %166 = arith.fptosi %165 : vector<1x128xf32> to vector<1x128xi32>
    %167 = tpu.iota {dimensions = array<i32: 0>} : vector<8x128xi32>
    %168 = vector.broadcast %166 : vector<1x128xi32> to vector<8x128xi32>
    %169 = arith.cmpi eq, %167, %168 : vector<8x128xi32>
    %cst_48 = arith.constant 0.000000e+00 : f32
    %170 = vector.broadcast %cst_48 : f32 to vector<8x128xf32>
    %171 = arith.select %169, %154, %170 : vector<8x128xi1>, vector<8x128xf32>
    %cst_49 = arith.constant dense<0.000000e+00> : vector<128xf32>
    %172 = vector.multi_reduction <add>, %171, %cst_49 [0] : vector<8x128xf32> to vector<128xf32>
    %173 = vector.shape_cast %172 : vector<128xf32> to vector<1x128xf32>
    %174 = arith.subf %163, %173 : vector<1x128xf32>
    %cst_50 = arith.constant dense<true> : vector<1x128xi1>
    %175 = arith.xori %107, %cst_50 : vector<1x128xi1>
    %cst_51 = arith.constant 0.000000e+00 : f32
    %176 = vector.broadcast %cst_51 : f32 to vector<1x128xf32>
    %177 = arith.select %175, %174, %176 : vector<1x128xi1>, vector<1x128xf32>
    %cst_52 = arith.constant 3.000000e+00 : f32
    %178 = arith.mulf %cst_52, %113 : f32
    %cst_53 = arith.constant 1.270000e+02 : f32
    %179 = arith.minimumf %178, %cst_53 : f32
    %180 = vector.shape_cast %177 : vector<1x128xf32> to vector<1x1x128xf32>
    %cst_54 = arith.constant dense<0xFF800000> : vector<1xf32>
    %181 = vector.multi_reduction <maximumf>, %180, %cst_54 [1, 2] : vector<1x1x128xf32> to vector<1xf32>
    %182 = vector.shape_cast %181 : vector<1xf32> to vector<1x1x1xf32>
    %183 = vector.extract %182[0, 0, 0] : f32 from vector<1x1x1xf32>
    %cst_55 = arith.constant -1.000000e+00 : f32
    %184 = arith.addf %cst_55, %183 : f32
    %cst_56 = arith.constant 5.000000e-01 : f32
    %185 = arith.mulf %cst_56, %184 : f32
    %186 = vector.broadcast %185 : f32 to vector<1x128xf32>
    %187 = arith.cmpf ogt, %177, %186 : vector<1x128xf32>
    %188 = arith.extui %187 : vector<1x128xi1> to vector<1x128xi32>
    %189 = arith.sitofp %188 : vector<1x128xi32> to vector<1x128xf32>
    %190 = vector.shape_cast %189 : vector<1x128xf32> to vector<1x1x128xf32>
    %cst_57 = arith.constant dense<0.000000e+00> : vector<1xf32>
    %191 = vector.multi_reduction <add>, %190, %cst_57 [1, 2] : vector<1x1x128xf32> to vector<1xf32>
    %192 = vector.shape_cast %191 : vector<1xf32> to vector<1x1x1xf32>
    %193 = vector.extract %192[0, 0, 0] : f32 from vector<1x1x1xf32>
    %194 = arith.cmpf ogt, %193, %179 : f32
    %cst_58 = arith.constant -1.000000e+00 : f32
    %195 = arith.select %194, %185, %cst_58 : f32
    %196 = arith.select %194, %183, %185 : f32
    %197 = arith.addf %195, %196 : f32
    %cst_59 = arith.constant 5.000000e-01 : f32
    %198 = arith.mulf %cst_59, %197 : f32
    %199 = vector.broadcast %198 : f32 to vector<1x128xf32>
    %200 = arith.cmpf ogt, %177, %199 : vector<1x128xf32>
    %201 = arith.extui %200 : vector<1x128xi1> to vector<1x128xi32>
    %202 = arith.sitofp %201 : vector<1x128xi32> to vector<1x128xf32>
    %203 = vector.shape_cast %202 : vector<1x128xf32> to vector<1x1x128xf32>
    %cst_60 = arith.constant dense<0.000000e+00> : vector<1xf32>
    %204 = vector.multi_reduction <add>, %203, %cst_60 [1, 2] : vector<1x1x128xf32> to vector<1xf32>
    %205 = vector.shape_cast %204 : vector<1xf32> to vector<1x1x1xf32>
    %206 = vector.extract %205[0, 0, 0] : f32 from vector<1x1x1xf32>
    %207 = arith.cmpf ogt, %206, %179 : f32
    %208 = arith.select %207, %198, %195 : f32
    %209 = arith.select %207, %196, %198 : f32
    %210 = arith.addf %208, %209 : f32
    %cst_61 = arith.constant 5.000000e-01 : f32
    %211 = arith.mulf %cst_61, %210 : f32
    %212 = vector.broadcast %211 : f32 to vector<1x128xf32>
    %213 = arith.cmpf ogt, %177, %212 : vector<1x128xf32>
    %214 = arith.extui %213 : vector<1x128xi1> to vector<1x128xi32>
    %215 = arith.sitofp %214 : vector<1x128xi32> to vector<1x128xf32>
    %216 = vector.shape_cast %215 : vector<1x128xf32> to vector<1x1x128xf32>
    %cst_62 = arith.constant dense<0.000000e+00> : vector<1xf32>
    %217 = vector.multi_reduction <add>, %216, %cst_62 [1, 2] : vector<1x1x128xf32> to vector<1xf32>
    %218 = vector.shape_cast %217 : vector<1xf32> to vector<1x1x1xf32>
    %219 = vector.extract %218[0, 0, 0] : f32 from vector<1x1x1xf32>
    %220 = arith.cmpf ogt, %219, %179 : f32
    %221 = arith.select %220, %211, %208 : f32
    %222 = arith.select %220, %209, %211 : f32
    %223 = arith.addf %221, %222 : f32
    %cst_63 = arith.constant 5.000000e-01 : f32
    %224 = arith.mulf %cst_63, %223 : f32
    %225 = vector.broadcast %224 : f32 to vector<1x128xf32>
    %226 = arith.cmpf ogt, %177, %225 : vector<1x128xf32>
    %227 = arith.extui %226 : vector<1x128xi1> to vector<1x128xi32>
    %228 = arith.sitofp %227 : vector<1x128xi32> to vector<1x128xf32>
    %229 = vector.shape_cast %228 : vector<1x128xf32> to vector<1x1x128xf32>
    %cst_64 = arith.constant dense<0.000000e+00> : vector<1xf32>
    %230 = vector.multi_reduction <add>, %229, %cst_64 [1, 2] : vector<1x1x128xf32> to vector<1xf32>
    %231 = vector.shape_cast %230 : vector<1xf32> to vector<1x1x1xf32>
    %232 = vector.extract %231[0, 0, 0] : f32 from vector<1x1x1xf32>
    %233 = arith.cmpf ogt, %232, %179 : f32
    %234 = arith.select %233, %224, %221 : f32
    %235 = arith.select %233, %222, %224 : f32
    %236 = arith.addf %234, %235 : f32
    %cst_65 = arith.constant 5.000000e-01 : f32
    %237 = arith.mulf %cst_65, %236 : f32
    %238 = vector.broadcast %237 : f32 to vector<1x128xf32>
    %239 = arith.cmpf ogt, %177, %238 : vector<1x128xf32>
    %240 = arith.extui %239 : vector<1x128xi1> to vector<1x128xi32>
    %241 = arith.sitofp %240 : vector<1x128xi32> to vector<1x128xf32>
    %242 = vector.shape_cast %241 : vector<1x128xf32> to vector<1x1x128xf32>
    %cst_66 = arith.constant dense<0.000000e+00> : vector<1xf32>
    %243 = vector.multi_reduction <add>, %242, %cst_66 [1, 2] : vector<1x1x128xf32> to vector<1xf32>
    %244 = vector.shape_cast %243 : vector<1xf32> to vector<1x1x1xf32>
    %245 = vector.extract %244[0, 0, 0] : f32 from vector<1x1x1xf32>
    %246 = arith.cmpf ogt, %245, %179 : f32
    %247 = arith.select %246, %237, %234 : f32
    %248 = arith.select %246, %235, %237 : f32
    %249 = arith.addf %247, %248 : f32
    %cst_67 = arith.constant 5.000000e-01 : f32
    %250 = arith.mulf %cst_67, %249 : f32
    %251 = vector.broadcast %250 : f32 to vector<1x128xf32>
    %252 = arith.cmpf ogt, %177, %251 : vector<1x128xf32>
    %253 = arith.extui %252 : vector<1x128xi1> to vector<1x128xi32>
    %254 = arith.sitofp %253 : vector<1x128xi32> to vector<1x128xf32>
    %255 = vector.shape_cast %254 : vector<1x128xf32> to vector<1x1x128xf32>
    %cst_68 = arith.constant dense<0.000000e+00> : vector<1xf32>
    %256 = vector.multi_reduction <add>, %255, %cst_68 [1, 2] : vector<1x1x128xf32> to vector<1xf32>
    %257 = vector.shape_cast %256 : vector<1xf32> to vector<1x1x1xf32>
    %258 = vector.extract %257[0, 0, 0] : f32 from vector<1x1x1xf32>
    %259 = arith.cmpf ogt, %258, %179 : f32
    %260 = arith.select %259, %250, %247 : f32
    %261 = arith.select %259, %248, %250 : f32
    %262 = arith.addf %260, %261 : f32
    %cst_69 = arith.constant 5.000000e-01 : f32
    %263 = arith.mulf %cst_69, %262 : f32
    %264 = vector.broadcast %263 : f32 to vector<1x128xf32>
    %265 = arith.cmpf ogt, %177, %264 : vector<1x128xf32>
    %266 = arith.extui %265 : vector<1x128xi1> to vector<1x128xi32>
    %267 = arith.sitofp %266 : vector<1x128xi32> to vector<1x128xf32>
    %268 = vector.shape_cast %267 : vector<1x128xf32> to vector<1x1x128xf32>
    %cst_70 = arith.constant dense<0.000000e+00> : vector<1xf32>
    %269 = vector.multi_reduction <add>, %268, %cst_70 [1, 2] : vector<1x1x128xf32> to vector<1xf32>
    %270 = vector.shape_cast %269 : vector<1xf32> to vector<1x1x1xf32>
    %271 = vector.extract %270[0, 0, 0] : f32 from vector<1x1x1xf32>
    %272 = arith.cmpf ogt, %271, %179 : f32
    %273 = arith.select %272, %263, %260 : f32
    %274 = arith.select %272, %261, %263 : f32
    %275 = arith.addf %273, %274 : f32
    %cst_71 = arith.constant 5.000000e-01 : f32
    %276 = arith.mulf %cst_71, %275 : f32
    %277 = vector.broadcast %276 : f32 to vector<1x128xf32>
    %278 = arith.cmpf ogt, %177, %277 : vector<1x128xf32>
    %279 = arith.extui %278 : vector<1x128xi1> to vector<1x128xi32>
    %280 = arith.sitofp %279 : vector<1x128xi32> to vector<1x128xf32>
    %281 = vector.shape_cast %280 : vector<1x128xf32> to vector<1x1x128xf32>
    %cst_72 = arith.constant dense<0.000000e+00> : vector<1xf32>
    %282 = vector.multi_reduction <add>, %281, %cst_72 [1, 2] : vector<1x1x128xf32> to vector<1xf32>
    %283 = vector.shape_cast %282 : vector<1xf32> to vector<1x1x1xf32>
    %284 = vector.extract %283[0, 0, 0] : f32 from vector<1x1x1xf32>
    %285 = arith.cmpf ogt, %284, %179 : f32
    %286 = arith.select %285, %276, %273 : f32
    %287 = arith.select %285, %274, %276 : f32
    %288 = arith.addf %286, %287 : f32
    %cst_73 = arith.constant 5.000000e-01 : f32
    %289 = arith.mulf %cst_73, %288 : f32
    %290 = vector.broadcast %289 : f32 to vector<1x128xf32>
    %291 = arith.cmpf ogt, %177, %290 : vector<1x128xf32>
    %292 = arith.extui %291 : vector<1x128xi1> to vector<1x128xi32>
    %293 = arith.sitofp %292 : vector<1x128xi32> to vector<1x128xf32>
    %294 = vector.shape_cast %293 : vector<1x128xf32> to vector<1x1x128xf32>
    %cst_74 = arith.constant dense<0.000000e+00> : vector<1xf32>
    %295 = vector.multi_reduction <add>, %294, %cst_74 [1, 2] : vector<1x1x128xf32> to vector<1xf32>
    %296 = vector.shape_cast %295 : vector<1xf32> to vector<1x1x1xf32>
    %297 = vector.extract %296[0, 0, 0] : f32 from vector<1x1x1xf32>
    %298 = arith.cmpf ogt, %297, %179 : f32
    %299 = arith.select %298, %289, %286 : f32
    %300 = arith.select %298, %287, %289 : f32
    %301 = arith.addf %299, %300 : f32
    %cst_75 = arith.constant 5.000000e-01 : f32
    %302 = arith.mulf %cst_75, %301 : f32
    %303 = vector.broadcast %302 : f32 to vector<1x128xf32>
    %304 = arith.cmpf ogt, %177, %303 : vector<1x128xf32>
    %305 = arith.extui %304 : vector<1x128xi1> to vector<1x128xi32>
    %306 = arith.sitofp %305 : vector<1x128xi32> to vector<1x128xf32>
    %307 = vector.shape_cast %306 : vector<1x128xf32> to vector<1x1x128xf32>
    %cst_76 = arith.constant dense<0.000000e+00> : vector<1xf32>
    %308 = vector.multi_reduction <add>, %307, %cst_76 [1, 2] : vector<1x1x128xf32> to vector<1xf32>
    %309 = vector.shape_cast %308 : vector<1xf32> to vector<1x1x1xf32>
    %310 = vector.extract %309[0, 0, 0] : f32 from vector<1x1x1xf32>
    %311 = arith.cmpf ogt, %310, %179 : f32
    %312 = arith.select %311, %302, %299 : f32
    %313 = arith.select %311, %300, %302 : f32
    %314 = arith.addf %312, %313 : f32
    %cst_77 = arith.constant 5.000000e-01 : f32
    %315 = arith.mulf %cst_77, %314 : f32
    %316 = vector.broadcast %315 : f32 to vector<1x128xf32>
    %317 = arith.cmpf ogt, %177, %316 : vector<1x128xf32>
    %318 = arith.extui %317 : vector<1x128xi1> to vector<1x128xi32>
    %319 = arith.sitofp %318 : vector<1x128xi32> to vector<1x128xf32>
    %320 = vector.shape_cast %319 : vector<1x128xf32> to vector<1x1x128xf32>
    %cst_78 = arith.constant dense<0.000000e+00> : vector<1xf32>
    %321 = vector.multi_reduction <add>, %320, %cst_78 [1, 2] : vector<1x1x128xf32> to vector<1xf32>
    %322 = vector.shape_cast %321 : vector<1xf32> to vector<1x1x1xf32>
    %323 = vector.extract %322[0, 0, 0] : f32 from vector<1x1x1xf32>
    %324 = arith.cmpf ogt, %323, %179 : f32
    %325 = arith.select %324, %315, %312 : f32
    %326 = arith.select %324, %313, %315 : f32
    %327 = arith.addf %325, %326 : f32
    %cst_79 = arith.constant 5.000000e-01 : f32
    %328 = arith.mulf %cst_79, %327 : f32
    %329 = vector.broadcast %328 : f32 to vector<1x128xf32>
    %330 = arith.cmpf ogt, %177, %329 : vector<1x128xf32>
    %331 = arith.extui %330 : vector<1x128xi1> to vector<1x128xi32>
    %332 = arith.sitofp %331 : vector<1x128xi32> to vector<1x128xf32>
    %333 = vector.shape_cast %332 : vector<1x128xf32> to vector<1x1x128xf32>
    %cst_80 = arith.constant dense<0.000000e+00> : vector<1xf32>
    %334 = vector.multi_reduction <add>, %333, %cst_80 [1, 2] : vector<1x1x128xf32> to vector<1xf32>
    %335 = vector.shape_cast %334 : vector<1xf32> to vector<1x1x1xf32>
    %336 = vector.extract %335[0, 0, 0] : f32 from vector<1x1x1xf32>
    %337 = arith.cmpf ogt, %336, %179 : f32
    %338 = arith.select %337, %328, %325 : f32
    %339 = arith.select %337, %326, %328 : f32
    %340 = arith.addf %338, %339 : f32
    %cst_81 = arith.constant 5.000000e-01 : f32
    %341 = arith.mulf %cst_81, %340 : f32
    %342 = vector.broadcast %341 : f32 to vector<1x128xf32>
    %343 = arith.cmpf ogt, %177, %342 : vector<1x128xf32>
    %344 = arith.extui %343 : vector<1x128xi1> to vector<1x128xi32>
    %345 = arith.sitofp %344 : vector<1x128xi32> to vector<1x128xf32>
    %346 = vector.shape_cast %345 : vector<1x128xf32> to vector<1x1x128xf32>
    %cst_82 = arith.constant dense<0.000000e+00> : vector<1xf32>
    %347 = vector.multi_reduction <add>, %346, %cst_82 [1, 2] : vector<1x1x128xf32> to vector<1xf32>
    %348 = vector.shape_cast %347 : vector<1xf32> to vector<1x1x1xf32>
    %349 = vector.extract %348[0, 0, 0] : f32 from vector<1x1x1xf32>
    %350 = arith.cmpf ogt, %349, %179 : f32
    %351 = arith.select %350, %341, %338 : f32
    %352 = arith.select %350, %339, %341 : f32
    %353 = arith.addf %351, %352 : f32
    %cst_83 = arith.constant 5.000000e-01 : f32
    %354 = arith.mulf %cst_83, %353 : f32
    %355 = vector.broadcast %354 : f32 to vector<1x128xf32>
    %356 = arith.cmpf ogt, %177, %355 : vector<1x128xf32>
    %357 = arith.extui %356 : vector<1x128xi1> to vector<1x128xi32>
    %358 = arith.sitofp %357 : vector<1x128xi32> to vector<1x128xf32>
    %359 = vector.shape_cast %358 : vector<1x128xf32> to vector<1x1x128xf32>
    %cst_84 = arith.constant dense<0.000000e+00> : vector<1xf32>
    %360 = vector.multi_reduction <add>, %359, %cst_84 [1, 2] : vector<1x1x128xf32> to vector<1xf32>
    %361 = vector.shape_cast %360 : vector<1xf32> to vector<1x1x1xf32>
    %362 = vector.extract %361[0, 0, 0] : f32 from vector<1x1x1xf32>
    %363 = arith.cmpf ogt, %362, %179 : f32
    %364 = arith.select %363, %354, %351 : f32
    %365 = arith.select %363, %352, %354 : f32
    %366 = arith.addf %364, %365 : f32
    %cst_85 = arith.constant 5.000000e-01 : f32
    %367 = arith.mulf %cst_85, %366 : f32
    %368 = vector.broadcast %367 : f32 to vector<1x128xf32>
    %369 = arith.cmpf ogt, %177, %368 : vector<1x128xf32>
    %370 = arith.extui %369 : vector<1x128xi1> to vector<1x128xi32>
    %371 = arith.sitofp %370 : vector<1x128xi32> to vector<1x128xf32>
    %372 = vector.shape_cast %371 : vector<1x128xf32> to vector<1x1x128xf32>
    %cst_86 = arith.constant dense<0.000000e+00> : vector<1xf32>
    %373 = vector.multi_reduction <add>, %372, %cst_86 [1, 2] : vector<1x1x128xf32> to vector<1xf32>
    %374 = vector.shape_cast %373 : vector<1xf32> to vector<1x1x1xf32>
    %375 = vector.extract %374[0, 0, 0] : f32 from vector<1x1x1xf32>
    %376 = arith.cmpf ogt, %375, %179 : f32
    %377 = arith.select %376, %367, %364 : f32
    %378 = arith.select %376, %365, %367 : f32
    %379 = arith.addf %377, %378 : f32
    %cst_87 = arith.constant 5.000000e-01 : f32
    %380 = arith.mulf %cst_87, %379 : f32
    %381 = vector.broadcast %380 : f32 to vector<1x128xf32>
    %382 = arith.cmpf ogt, %177, %381 : vector<1x128xf32>
    %383 = arith.extui %382 : vector<1x128xi1> to vector<1x128xi32>
    %384 = arith.sitofp %383 : vector<1x128xi32> to vector<1x128xf32>
    %385 = vector.shape_cast %384 : vector<1x128xf32> to vector<1x1x128xf32>
    %cst_88 = arith.constant dense<0.000000e+00> : vector<1xf32>
    %386 = vector.multi_reduction <add>, %385, %cst_88 [1, 2] : vector<1x1x128xf32> to vector<1xf32>
    %387 = vector.shape_cast %386 : vector<1xf32> to vector<1x1x1xf32>
    %388 = vector.extract %387[0, 0, 0] : f32 from vector<1x1x1xf32>
    %389 = arith.cmpf ogt, %388, %179 : f32
    %390 = arith.select %389, %380, %377 : f32
    %391 = arith.select %389, %378, %380 : f32
    %392 = arith.addf %390, %391 : f32
    %cst_89 = arith.constant 5.000000e-01 : f32
    %393 = arith.mulf %cst_89, %392 : f32
    %394 = vector.broadcast %393 : f32 to vector<1x128xf32>
    %395 = arith.cmpf ogt, %177, %394 : vector<1x128xf32>
    %396 = arith.extui %395 : vector<1x128xi1> to vector<1x128xi32>
    %397 = arith.sitofp %396 : vector<1x128xi32> to vector<1x128xf32>
    %398 = vector.shape_cast %397 : vector<1x128xf32> to vector<1x1x128xf32>
    %cst_90 = arith.constant dense<0.000000e+00> : vector<1xf32>
    %399 = vector.multi_reduction <add>, %398, %cst_90 [1, 2] : vector<1x1x128xf32> to vector<1xf32>
    %400 = vector.shape_cast %399 : vector<1xf32> to vector<1x1x1xf32>
    %401 = vector.extract %400[0, 0, 0] : f32 from vector<1x1x1xf32>
    %402 = arith.cmpf ogt, %401, %179 : f32
    %403 = arith.select %402, %393, %390 : f32
    %404 = arith.select %402, %391, %393 : f32
    %405 = arith.addf %403, %404 : f32
    %cst_91 = arith.constant 5.000000e-01 : f32
    %406 = arith.mulf %cst_91, %405 : f32
    %407 = vector.broadcast %406 : f32 to vector<1x128xf32>
    %408 = arith.cmpf ogt, %177, %407 : vector<1x128xf32>
    %409 = arith.extui %408 : vector<1x128xi1> to vector<1x128xi32>
    %410 = arith.sitofp %409 : vector<1x128xi32> to vector<1x128xf32>
    %411 = vector.shape_cast %410 : vector<1x128xf32> to vector<1x1x128xf32>
    %cst_92 = arith.constant dense<0.000000e+00> : vector<1xf32>
    %412 = vector.multi_reduction <add>, %411, %cst_92 [1, 2] : vector<1x1x128xf32> to vector<1xf32>
    %413 = vector.shape_cast %412 : vector<1xf32> to vector<1x1x1xf32>
    %414 = vector.extract %413[0, 0, 0] : f32 from vector<1x1x1xf32>
    %415 = arith.cmpf ogt, %414, %179 : f32
    %416 = arith.select %415, %406, %403 : f32
    %417 = arith.select %415, %404, %406 : f32
    %418 = arith.addf %416, %417 : f32
    %cst_93 = arith.constant 5.000000e-01 : f32
    %419 = arith.mulf %cst_93, %418 : f32
    %420 = vector.broadcast %419 : f32 to vector<1x128xf32>
    %421 = arith.cmpf ogt, %177, %420 : vector<1x128xf32>
    %422 = arith.extui %421 : vector<1x128xi1> to vector<1x128xi32>
    %423 = arith.sitofp %422 : vector<1x128xi32> to vector<1x128xf32>
    %424 = vector.shape_cast %423 : vector<1x128xf32> to vector<1x1x128xf32>
    %cst_94 = arith.constant dense<0.000000e+00> : vector<1xf32>
    %425 = vector.multi_reduction <add>, %424, %cst_94 [1, 2] : vector<1x1x128xf32> to vector<1xf32>
    %426 = vector.shape_cast %425 : vector<1xf32> to vector<1x1x1xf32>
    %427 = vector.extract %426[0, 0, 0] : f32 from vector<1x1x1xf32>
    %428 = arith.cmpf ogt, %427, %179 : f32
    %429 = arith.select %428, %419, %416 : f32
    %430 = arith.select %428, %417, %419 : f32
    %431 = arith.addf %429, %430 : f32
    %cst_95 = arith.constant 5.000000e-01 : f32
    %432 = arith.mulf %cst_95, %431 : f32
    %433 = vector.broadcast %432 : f32 to vector<1x128xf32>
    %434 = arith.cmpf ogt, %177, %433 : vector<1x128xf32>
    %435 = arith.extui %434 : vector<1x128xi1> to vector<1x128xi32>
    %436 = arith.sitofp %435 : vector<1x128xi32> to vector<1x128xf32>
    %437 = vector.shape_cast %436 : vector<1x128xf32> to vector<1x1x128xf32>
    %cst_96 = arith.constant dense<0.000000e+00> : vector<1xf32>
    %438 = vector.multi_reduction <add>, %437, %cst_96 [1, 2] : vector<1x1x128xf32> to vector<1xf32>
    %439 = vector.shape_cast %438 : vector<1xf32> to vector<1x1x1xf32>
    %440 = vector.extract %439[0, 0, 0] : f32 from vector<1x1x1xf32>
    %441 = arith.cmpf ogt, %440, %179 : f32
    %442 = arith.select %441, %432, %429 : f32
    %443 = arith.select %441, %430, %432 : f32
    %444 = arith.addf %442, %443 : f32
    %cst_97 = arith.constant 5.000000e-01 : f32
    %445 = arith.mulf %cst_97, %444 : f32
    %446 = vector.broadcast %445 : f32 to vector<1x128xf32>
    %447 = arith.cmpf ogt, %177, %446 : vector<1x128xf32>
    %448 = arith.extui %447 : vector<1x128xi1> to vector<1x128xi32>
    %449 = arith.sitofp %448 : vector<1x128xi32> to vector<1x128xf32>
    %450 = vector.shape_cast %449 : vector<1x128xf32> to vector<1x1x128xf32>
    %cst_98 = arith.constant dense<0.000000e+00> : vector<1xf32>
    %451 = vector.multi_reduction <add>, %450, %cst_98 [1, 2] : vector<1x1x128xf32> to vector<1xf32>
    %452 = vector.shape_cast %451 : vector<1xf32> to vector<1x1x1xf32>
    %453 = vector.extract %452[0, 0, 0] : f32 from vector<1x1x1xf32>
    %454 = arith.cmpf ogt, %453, %179 : f32
    %455 = arith.select %454, %445, %442 : f32
    %456 = arith.select %454, %443, %445 : f32
    %457 = arith.addf %455, %456 : f32
    %cst_99 = arith.constant 5.000000e-01 : f32
    %458 = arith.mulf %cst_99, %457 : f32
    %459 = vector.broadcast %458 : f32 to vector<1x128xf32>
    %460 = arith.cmpf ogt, %177, %459 : vector<1x128xf32>
    %461 = arith.extui %460 : vector<1x128xi1> to vector<1x128xi32>
    %462 = arith.sitofp %461 : vector<1x128xi32> to vector<1x128xf32>
    %463 = vector.shape_cast %462 : vector<1x128xf32> to vector<1x1x128xf32>
    %cst_100 = arith.constant dense<0.000000e+00> : vector<1xf32>
    %464 = vector.multi_reduction <add>, %463, %cst_100 [1, 2] : vector<1x1x128xf32> to vector<1xf32>
    %465 = vector.shape_cast %464 : vector<1xf32> to vector<1x1x1xf32>
    %466 = vector.extract %465[0, 0, 0] : f32 from vector<1x1x1xf32>
    %467 = arith.cmpf ogt, %466, %179 : f32
    %468 = arith.select %467, %458, %455 : f32
    %469 = arith.select %467, %456, %458 : f32
    %470 = arith.addf %468, %469 : f32
    %cst_101 = arith.constant 5.000000e-01 : f32
    %471 = arith.mulf %cst_101, %470 : f32
    %472 = vector.broadcast %471 : f32 to vector<1x128xf32>
    %473 = arith.cmpf ogt, %177, %472 : vector<1x128xf32>
    %474 = arith.extui %473 : vector<1x128xi1> to vector<1x128xi32>
    %475 = arith.sitofp %474 : vector<1x128xi32> to vector<1x128xf32>
    %476 = vector.shape_cast %475 : vector<1x128xf32> to vector<1x1x128xf32>
    %cst_102 = arith.constant dense<0.000000e+00> : vector<1xf32>
    %477 = vector.multi_reduction <add>, %476, %cst_102 [1, 2] : vector<1x1x128xf32> to vector<1xf32>
    %478 = vector.shape_cast %477 : vector<1xf32> to vector<1x1x1xf32>
    %479 = vector.extract %478[0, 0, 0] : f32 from vector<1x1x1xf32>
    %480 = arith.cmpf ogt, %479, %179 : f32
    %481 = arith.select %480, %471, %468 : f32
    %482 = arith.select %480, %469, %471 : f32
    %483 = arith.addf %481, %482 : f32
    %cst_103 = arith.constant 5.000000e-01 : f32
    %484 = arith.mulf %cst_103, %483 : f32
    %485 = vector.broadcast %484 : f32 to vector<1x128xf32>
    %486 = arith.cmpf ogt, %177, %485 : vector<1x128xf32>
    %487 = arith.extui %486 : vector<1x128xi1> to vector<1x128xi32>
    %488 = arith.sitofp %487 : vector<1x128xi32> to vector<1x128xf32>
    %489 = vector.shape_cast %488 : vector<1x128xf32> to vector<1x1x128xf32>
    %cst_104 = arith.constant dense<0.000000e+00> : vector<1xf32>
    %490 = vector.multi_reduction <add>, %489, %cst_104 [1, 2] : vector<1x1x128xf32> to vector<1xf32>
    %491 = vector.shape_cast %490 : vector<1xf32> to vector<1x1x1xf32>
    %492 = vector.extract %491[0, 0, 0] : f32 from vector<1x1x1xf32>
    %493 = arith.cmpf ogt, %492, %179 : f32
    %494 = arith.select %493, %484, %481 : f32
    %495 = arith.select %493, %482, %484 : f32
    %496 = arith.addf %494, %495 : f32
    %cst_105 = arith.constant 5.000000e-01 : f32
    %497 = arith.mulf %cst_105, %496 : f32
    %498 = vector.broadcast %497 : f32 to vector<1x128xf32>
    %499 = arith.cmpf ogt, %177, %498 : vector<1x128xf32>
    %500 = arith.extui %499 : vector<1x128xi1> to vector<1x128xi32>
    %501 = arith.sitofp %500 : vector<1x128xi32> to vector<1x128xf32>
    %502 = vector.shape_cast %501 : vector<1x128xf32> to vector<1x1x128xf32>
    %cst_106 = arith.constant dense<0.000000e+00> : vector<1xf32>
    %503 = vector.multi_reduction <add>, %502, %cst_106 [1, 2] : vector<1x1x128xf32> to vector<1xf32>
    %504 = vector.shape_cast %503 : vector<1xf32> to vector<1x1x1xf32>
    %505 = vector.extract %504[0, 0, 0] : f32 from vector<1x1x1xf32>
    %506 = arith.cmpf ogt, %505, %179 : f32
    %507 = arith.select %506, %497, %494 : f32
    %508 = arith.select %506, %495, %497 : f32
    %509 = arith.addf %507, %508 : f32
    %cst_107 = arith.constant 5.000000e-01 : f32
    %510 = arith.mulf %cst_107, %509 : f32
    %511 = vector.broadcast %510 : f32 to vector<1x128xf32>
    %512 = arith.cmpf ogt, %177, %511 : vector<1x128xf32>
    %513 = arith.extui %512 : vector<1x128xi1> to vector<1x128xi32>
    %514 = arith.sitofp %513 : vector<1x128xi32> to vector<1x128xf32>
    %515 = vector.shape_cast %514 : vector<1x128xf32> to vector<1x1x128xf32>
    %cst_108 = arith.constant dense<0.000000e+00> : vector<1xf32>
    %516 = vector.multi_reduction <add>, %515, %cst_108 [1, 2] : vector<1x1x128xf32> to vector<1xf32>
    %517 = vector.shape_cast %516 : vector<1xf32> to vector<1x1x1xf32>
    %518 = vector.extract %517[0, 0, 0] : f32 from vector<1x1x1xf32>
    %519 = arith.cmpf ogt, %518, %179 : f32
    %520 = arith.select %519, %510, %507 : f32
    %521 = arith.select %519, %508, %510 : f32
    %522 = arith.addf %520, %521 : f32
    %cst_109 = arith.constant 5.000000e-01 : f32
    %523 = arith.mulf %cst_109, %522 : f32
    %524 = vector.broadcast %523 : f32 to vector<1x128xf32>
    %525 = arith.cmpf ogt, %177, %524 : vector<1x128xf32>
    %526 = arith.extui %525 : vector<1x128xi1> to vector<1x128xi32>
    %527 = arith.sitofp %526 : vector<1x128xi32> to vector<1x128xf32>
    %528 = vector.shape_cast %527 : vector<1x128xf32> to vector<1x1x128xf32>
    %cst_110 = arith.constant dense<0.000000e+00> : vector<1xf32>
    %529 = vector.multi_reduction <add>, %528, %cst_110 [1, 2] : vector<1x1x128xf32> to vector<1xf32>
    %530 = vector.shape_cast %529 : vector<1xf32> to vector<1x1x1xf32>
    %531 = vector.extract %530[0, 0, 0] : f32 from vector<1x1x1xf32>
    %532 = arith.cmpf ogt, %531, %179 : f32
    %533 = arith.select %532, %523, %520 : f32
    %534 = arith.select %532, %521, %523 : f32
    %535 = arith.addf %533, %534 : f32
    %cst_111 = arith.constant 5.000000e-01 : f32
    %536 = arith.mulf %cst_111, %535 : f32
    %537 = vector.broadcast %536 : f32 to vector<1x128xf32>
    %538 = arith.cmpf ogt, %177, %537 : vector<1x128xf32>
    %539 = arith.extui %538 : vector<1x128xi1> to vector<1x128xi32>
    %540 = arith.sitofp %539 : vector<1x128xi32> to vector<1x128xf32>
    %541 = vector.shape_cast %540 : vector<1x128xf32> to vector<1x1x128xf32>
    %cst_112 = arith.constant dense<0.000000e+00> : vector<1xf32>
    %542 = vector.multi_reduction <add>, %541, %cst_112 [1, 2] : vector<1x1x128xf32> to vector<1xf32>
    %543 = vector.shape_cast %542 : vector<1xf32> to vector<1x1x1xf32>
    %544 = vector.extract %543[0, 0, 0] : f32 from vector<1x1x1xf32>
    %545 = arith.cmpf ogt, %544, %179 : f32
    %546 = arith.select %545, %536, %533 : f32
    %547 = arith.select %545, %534, %536 : f32
    %548 = arith.addf %546, %547 : f32
    %cst_113 = arith.constant 5.000000e-01 : f32
    %549 = arith.mulf %cst_113, %548 : f32
    %550 = vector.broadcast %549 : f32 to vector<1x128xf32>
    %551 = arith.cmpf ogt, %177, %550 : vector<1x128xf32>
    %552 = arith.extui %551 : vector<1x128xi1> to vector<1x128xi32>
    %553 = arith.sitofp %552 : vector<1x128xi32> to vector<1x128xf32>
    %554 = vector.shape_cast %553 : vector<1x128xf32> to vector<1x1x128xf32>
    %cst_114 = arith.constant dense<0.000000e+00> : vector<1xf32>
    %555 = vector.multi_reduction <add>, %554, %cst_114 [1, 2] : vector<1x1x128xf32> to vector<1xf32>
    %556 = vector.shape_cast %555 : vector<1xf32> to vector<1x1x1xf32>
    %557 = vector.extract %556[0, 0, 0] : f32 from vector<1x1x1xf32>
    %558 = arith.cmpf ogt, %557, %179 : f32
    %559 = arith.select %558, %549, %546 : f32
    %560 = arith.select %558, %547, %549 : f32
    %561 = arith.addf %559, %560 : f32
    %cst_115 = arith.constant 5.000000e-01 : f32
    %562 = arith.mulf %cst_115, %561 : f32
    %563 = vector.broadcast %562 : f32 to vector<1x128xf32>
    %564 = arith.cmpf ogt, %177, %563 : vector<1x128xf32>
    %565 = arith.extui %564 : vector<1x128xi1> to vector<1x128xi32>
    %566 = arith.sitofp %565 : vector<1x128xi32> to vector<1x128xf32>
    %567 = vector.shape_cast %566 : vector<1x128xf32> to vector<1x1x128xf32>
    %cst_116 = arith.constant dense<0.000000e+00> : vector<1xf32>
    %568 = vector.multi_reduction <add>, %567, %cst_116 [1, 2] : vector<1x1x128xf32> to vector<1xf32>
    %569 = vector.shape_cast %568 : vector<1xf32> to vector<1x1x1xf32>
    %570 = vector.extract %569[0, 0, 0] : f32 from vector<1x1x1xf32>
    %571 = arith.cmpf ogt, %570, %179 : f32
    %572 = arith.select %571, %560, %562 : f32
    %573 = vector.broadcast %572 : f32 to vector<1x128xf32>
    %574 = arith.cmpf ogt, %177, %573 : vector<1x128xf32>
    %575 = arith.extui %574 : vector<1x128xi1> to vector<1x128xi32>
    %576 = arith.sitofp %575 : vector<1x128xi32> to vector<1x128xf32>
    %577 = vector.shape_cast %576 : vector<1x128xf32> to vector<1x1x128xf32>
    %cst_117 = arith.constant dense<0.000000e+00> : vector<1xf32>
    %578 = vector.multi_reduction <add>, %577, %cst_117 [1, 2] : vector<1x1x128xf32> to vector<1xf32>
    %579 = vector.shape_cast %578 : vector<1xf32> to vector<1x1x1xf32>
    %580 = vector.extract %579[0, 0, 0] : f32 from vector<1x1x1xf32>
    %cst_118 = arith.constant 0.000000e+00 : f32
    %581 = vector.broadcast %cst_118 : f32 to vector<1x128xf32>
    %582 = arith.select %107, %152, %581 : vector<1x128xi1>, vector<1x128xf32>
    %cst_119 = arith.constant 0.000000e+00 : f32
    %583 = vector.broadcast %cst_119 : f32 to vector<1x128xf32>
    %584 = arith.select %107, %174, %583 : vector<1x128xi1>, vector<1x128xf32>
    %cst_120 = arith.constant 0.000000e+00 : f32
    %585 = vector.broadcast %cst_120 : f32 to vector<1x128xf32>
    %586 = arith.select %574, %177, %585 : vector<1x128xi1>, vector<1x128xf32>
    %587 = tpu.concatenate %582, %584, %586 in 0 : vector<1x128xf32>, vector<1x128xf32>, vector<1x128xf32> -> vector<3x128xf32>
    %cst_121 = arith.constant dense<0.000000e+00> : vector<3xf32>
    %588 = vector.multi_reduction <add>, %587, %cst_121 [1] : vector<3x128xf32> to vector<3xf32>
    %589 = vector.shape_cast %588 : vector<3xf32> to vector<3x1xf32>
    %590 = vector.extract_strided_slice %589 {offsets = [0, 0], sizes = [1, 1], strides = [1, 1]} : vector<3x1xf32> to vector<1x1xf32>
    %591 = vector.extract_strided_slice %589 {offsets = [1, 0], sizes = [1, 1], strides = [1, 1]} : vector<3x1xf32> to vector<1x1xf32>
    %592 = vector.extract_strided_slice %589 {offsets = [2, 0], sizes = [1, 1], strides = [1, 1]} : vector<3x1xf32> to vector<1x1xf32>
    %593 = arith.subf %179, %580 : f32
    %cst_122 = arith.constant 0.000000e+00 : f32
    %594 = arith.maximumf %593, %cst_122 : f32
    %595 = arith.mulf %594, %572 : f32
    %596 = vector.broadcast %595 : f32 to vector<1x1xf32>
    %597 = arith.addf %592, %596 : vector<1x1xf32>
    %598 = tpu.iota {dimensions = array<i32: 1>} : vector<8x128xi32>
    %c0_i32 = arith.constant 0 : i32
    %599 = vector.broadcast %c0_i32 : i32 to vector<8x128xi32>
    %600 = arith.cmpi eq, %598, %599 : vector<8x128xi32>
    %cst_123 = arith.constant 0.000000e+00 : f32
    %601 = vector.shape_cast %590 : vector<1x1xf32> to vector<1x1xf32>
    %602 = vector.broadcast %601 : vector<1x1xf32> to vector<8x128xf32>
    %603 = vector.broadcast %cst_123 : f32 to vector<8x128xf32>
    %604 = arith.select %600, %602, %603 : vector<8x128xi1>, vector<8x128xf32>
    %c1_i32 = arith.constant 1 : i32
    %605 = vector.broadcast %c1_i32 : i32 to vector<8x128xi32>
    %606 = arith.cmpi eq, %598, %605 : vector<8x128xi32>
    %cst_124 = arith.constant 0.000000e+00 : f32
    %607 = vector.shape_cast %591 : vector<1x1xf32> to vector<1x1xf32>
    %608 = vector.broadcast %607 : vector<1x1xf32> to vector<8x128xf32>
    %609 = vector.broadcast %cst_124 : f32 to vector<8x128xf32>
    %610 = arith.select %606, %608, %609 : vector<8x128xi1>, vector<8x128xf32>
    %611 = arith.addf %604, %610 : vector<8x128xf32>
    %c2_i32 = arith.constant 2 : i32
    %612 = vector.broadcast %c2_i32 : i32 to vector<8x128xi32>
    %613 = arith.cmpi eq, %598, %612 : vector<8x128xi32>
    %cst_125 = arith.constant 0.000000e+00 : f32
    %614 = vector.shape_cast %597 : vector<1x1xf32> to vector<1x1xf32>
    %615 = vector.broadcast %614 : vector<1x1xf32> to vector<8x128xf32>
    %616 = vector.broadcast %cst_125 : f32 to vector<8x128xf32>
    %617 = arith.select %613, %615, %616 : vector<8x128xi1>, vector<8x128xf32>
    %618 = arith.addf %611, %617 : vector<8x128xf32>
    %c3_i32 = arith.constant 3 : i32
    %619 = vector.broadcast %c3_i32 : i32 to vector<8x128xi32>
    %620 = arith.cmpi eq, %598, %619 : vector<8x128xi32>
    %cst_126 = arith.constant 0.000000e+00 : f32
    %621 = vector.broadcast %113 : f32 to vector<8x128xf32>
    %622 = vector.broadcast %cst_126 : f32 to vector<8x128xf32>
    %623 = arith.select %620, %621, %622 : vector<8x128xi1>, vector<8x128xf32>
    %624 = arith.addf %618, %623 : vector<8x128xf32>
    %c0_127 = arith.constant 0 : index
    %c0_128 = arith.constant 0 : index
    %c0_129 = arith.constant 0 : index
    %625 = vector.load %arg6[%c0_127, %c0_128, %c0_129] : memref<1x8x128xf32, #tpu.memory_space<vmem>>, vector<1x8x128xf32>
    %626 = vector.shape_cast %625 : vector<1x8x128xf32> to vector<8x128xf32>
    %627 = vector.shape_cast %624 : vector<8x128xf32> to vector<1x8x128xf32>
    tpu.vector_store %arg6[%c0_127, %c0_128, %c0_129], %627 {strides = array<i32>} : memref<1x8x128xf32, #tpu.memory_space<vmem>>, vector<1x8x128xf32>,
    return
  }
  func.func @transform_0(%arg0: i32) -> (i32, i32, i32) {
    %c0_i32 = arith.constant 0 : i32
    %c0_i32_0 = arith.constant 0 : i32
    %c0_i32_1 = arith.constant 0 : i32
    return %arg0, %c0_i32, %c0_i32_0 : i32, i32, i32
  }
  func.func @transform_1(%arg0: i32) -> (i32, i32, i32) {
    %c0_i32 = arith.constant 0 : i32
    %c0_i32_0 = arith.constant 0 : i32
    %c0_i32_1 = arith.constant 0 : i32
    return %arg0, %c0_i32, %c0_i32_0 : i32, i32, i32
  }
  func.func @transform_2(%arg0: i32) -> (i32, i32) {
    %c0_i32 = arith.constant 0 : i32
    %c0_i32_0 = arith.constant 0 : i32
    %c0_i32_1 = arith.constant 0 : i32
    return %c0_i32, %c0_i32_0 : i32, i32
  }
  func.func @transform_3(%arg0: i32) -> (i32, i32, i32) {
    %c0_i32 = arith.constant 0 : i32
    %c0_i32_0 = arith.constant 0 : i32
    %c0_i32_1 = arith.constant 0 : i32
    return %arg0, %c0_i32, %c0_i32_0 : i32, i32, i32
  }
  func.func @transform_4(%arg0: i32) -> (i32, i32, i32) {
    %c0_i32 = arith.constant 0 : i32
    %c0_i32_0 = arith.constant 0 : i32
    %c0_i32_1 = arith.constant 0 : i32
    return %arg0, %c0_i32, %c0_i32_0 : i32, i32, i32
  }
  func.func @transform_5(%arg0: i32) -> (i32, i32, i32) {
    %c0_i32 = arith.constant 0 : i32
    %c0_i32_0 = arith.constant 0 : i32
    %c0_i32_1 = arith.constant 0 : i32
    return %arg0, %c0_i32, %c0_i32_0 : i32, i32, i32
  }
}

</mosaic_0001>

<llo_original>
// kernel: multibox_loss_pallas.1
$region0: #{multibox_loss_pallas.1}
  #allocation0 [shape = 'u32[]', space=smem, size = 0x4, offset = 0x4, fixed_abs, tag = 'smem constant byte address 0x4 - core index']
  #allocation1 [shape = 'u32[144,128]{1,0:T(1,128)}', space=vmem, size = 0x12000, scoped, tag = 'internal scratch']
  %s0 = inlined_call_operand.vmem [shape: f32[2,4,128], index: 0, kind: input, shape index: {}]
  %s1 = inlined_call_operand.vmem [shape: f32[2,8,128], index: 1, kind: input, shape index: {}]
  %s2 = inlined_call_operand.vmem [shape: f32[4,128], index: 2, kind: input, shape index: {}]
  %s3 = inlined_call_operand.vmem [shape: f32[2,8,4], index: 3, kind: input, shape index: {}]
  %s4 = inlined_call_operand.vmem [shape: f32[2,8,8], index: 4, kind: input, shape index: {}]
  %s5 = inlined_call_operand.vmem [shape: f32[2,8,128], index: 5, kind: output, shape index: {}]
  %s6 = sld [smem:[#allocation0]]
  $region53: #{multibox_loss_pallas.1} parent=0
    _
  %s8 = ssub.s32 1, %s6
  %s9 = scalar_select 0, %s8, %s6
  loop: start=0, step=1, limit=4
  $region2: #{multibox_loss_pallas.1} parent=0 // loop_pre_header
    _
  $region3: #{multibox_loss_pallas.1} parent=0 // loop_header
    %s11 = sphi 0, %s15
    %p12 = scmp.ge.s32.totalorder %s11, 4
    %s21 = sphi 0, %s23
    %s24 = sphi 0, %s21
    %s25 = sphi 0, %s24
    %s41 = sphi 0, %s25
    %s47 = sphi 0, %s49
    %s50 = sphi 0, %s47
    %s51 = sphi 0, %s50
    %s67 = sphi 0, %s51
    %s71 = sphi 0, %s71
    %s73 = sphi 0, %s71
    %s74 = sphi 0, %s73
    %s88 = sphi 0, %s74
    %s94 = sphi 0, %s96
    %s97 = sphi 0, %s94
    %s98 = sphi 0, %s97
    %s114 = sphi 0, %s98
    %s120 = sphi 0, %s122
    %s123 = sphi 0, %s120
    %s124 = sphi 0, %s123
    %s140 = sphi 0, %s124
    %s146 = sphi 0, %s148
    %s149 = sphi 0, %s146
    %s150 = sphi 0, %s149
    %s166 = sphi 0, %s150
  $region4: #{multibox_loss_pallas.1} parent=0 // loop_header_branch
    %14 = sbr.rel (%p12) target = $region8
  $region5: #{multibox_loss_pallas.1} parent=0 // loop_body
    %s16 = ssub.s32 %s11, 1
    %s17 = ssub.s32 %s11, 2
    %s18 = sadd.s32 %s11, 1
    %s19 = ssub.s32 %s11, %s18
    %p20 = scmp.eq.s32.totalorder %s19, 0
    %s22 = sadd.s32 %s21, 1
    %s23 = scalar_select %p20, %s21, %s22
    %p26 = pneg %p20
    %p27 = scmp.eq.s32.totalorder %s11, 1
    %p28 = por %p26, %p27
    %p29 = scmp.ne.s32.totalorder %s21, %s24
    %p30 = scmp.eq.s32.totalorder %s11, 0
    %p31 = por %p29, %p30
    %p32 = scmp.ne.s32.totalorder %s21, %s24
    %p33 = scmp.eq.s32.totalorder %s16, 1
    %p34 = por %p32, %p33
    %p35 = scmp.ne.s32.totalorder %s24, %s25
    %p36 = scmp.eq.s32.totalorder %s16, 0
    %p37 = por %p35, %p36
    %p38 = scmp.ne.s32.totalorder %s24, %s25
    %p39 = scmp.eq.s32.totalorder %s17, 1
    %p40 = por %p38, %p39
    %p42 = scmp.ne.s32.totalorder %s25, %s41
    %p43 = scmp.eq.s32.totalorder %s17, 0
    %p44 = por %p42, %p43
    %s45 = ssub.s32 %s11, %s18
    %p46 = scmp.eq.s32.totalorder %s45, 0
    %s48 = sadd.s32 %s47, 1
    %s49 = scalar_select %p46, %s47, %s48
    %p52 = pneg %p46
    %p53 = scmp.eq.s32.totalorder %s11, 1
    %p54 = por %p52, %p53
    %p55 = scmp.ne.s32.totalorder %s47, %s50
    %p56 = scmp.eq.s32.totalorder %s11, 0
    %p57 = por %p55, %p56
    %p58 = scmp.ne.s32.totalorder %s47, %s50
    %p59 = scmp.eq.s32.totalorder %s16, 1
    %p60 = por %p58, %p59
    %p61 = scmp.ne.s32.totalorder %s50, %s51
    %p62 = scmp.eq.s32.totalorder %s16, 0
    %p63 = por %p61, %p62
    %p64 = scmp.ne.s32.totalorder %s50, %s51
    %p65 = scmp.eq.s32.totalorder %s17, 1
    %p66 = por %p64, %p65
    %p68 = scmp.ne.s32.totalorder %s51, %s67
    %p69 = scmp.eq.s32.totalorder %s17, 0
    %p70 = por %p68, %p69
    %s72 = sadd.s32 %s71, 1
    %p75 = scmp.eq.s32.totalorder %s11, 1
    %p76 = scmp.ne.s32.totalorder %s71, %s73
    %p77 = scmp.eq.s32.totalorder %s11, 0
    %p78 = por %p76, %p77
    %p79 = scmp.ne.s32.totalorder %s71, %s73
    %p80 = scmp.eq.s32.totalorder %s16, 1
    %p81 = por %p79, %p80
    %p82 = scmp.ne.s32.totalorder %s73, %s74
    %p83 = scmp.eq.s32.totalorder %s16, 0
    %p84 = por %p82, %p83
    %p85 = scmp.ne.s32.totalorder %s73, %s74
    %p86 = scmp.eq.s32.totalorder %s17, 1
    %p87 = por %p85, %p86
    %p89 = scmp.ne.s32.totalorder %s74, %s88
    %p90 = scmp.eq.s32.totalorder %s17, 0
    %p91 = por %p89, %p90
    %s92 = ssub.s32 %s11, %s18
    %p93 = scmp.eq.s32.totalorder %s92, 0
    %s95 = sadd.s32 %s94, 1
    %s96 = scalar_select %p93, %s94, %s95
    %p99 = pneg %p93
    %p100 = scmp.eq.s32.totalorder %s11, 1
    %p101 = por %p99, %p100
    %p102 = scmp.ne.s32.totalorder %s94, %s97
    %p103 = scmp.eq.s32.totalorder %s11, 0
    %p104 = por %p102, %p103
    %p105 = scmp.ne.s32.totalorder %s94, %s97
    %p106 = scmp.eq.s32.totalorder %s16, 1
    %p107 = por %p105, %p106
    %p108 = scmp.ne.s32.totalorder %s97, %s98
    %p109 = scmp.eq.s32.totalorder %s16, 0
    %p110 = por %p108, %p109
    %p111 = scmp.ne.s32.totalorder %s97, %s98
    %p112 = scmp.eq.s32.totalorder %s17, 1
    %p113 = por %p111, %p112
    %p115 = scmp.ne.s32.totalorder %s98, %s114
    %p116 = scmp.eq.s32.totalorder %s17, 0
    %p117 = por %p115, %p116
    %s118 = ssub.s32 %s11, %s18
    %p119 = scmp.eq.s32.totalorder %s118, 0
    %s121 = sadd.s32 %s120, 1
    %s122 = scalar_select %p119, %s120, %s121
    %p125 = pneg %p119
    %p126 = scmp.eq.s32.totalorder %s11, 1
    %p127 = por %p125, %p126
    %p128 = scmp.ne.s32.totalorder %s120, %s123
    %p129 = scmp.eq.s32.totalorder %s11, 0
    %p130 = por %p128, %p129
    %p131 = scmp.ne.s32.totalorder %s120, %s123
    %p132 = scmp.eq.s32.totalorder %s16, 1
    %p133 = por %p131, %p132
    %p134 = scmp.ne.s32.totalorder %s123, %s124
    %p135 = scmp.eq.s32.totalorder %s16, 0
    %p136 = por %p134, %p135
    %p137 = scmp.ne.s32.totalorder %s123, %s124
    %p138 = scmp.eq.s32.totalorder %s17, 1
    %p139 = por %p137, %p138
    %p141 = scmp.ne.s32.totalorder %s124, %s140
    %p142 = scmp.eq.s32.totalorder %s17, 0
    %p143 = por %p141, %p142
    %s144 = ssub.s32 %s11, %s18
    %p145 = scmp.eq.s32.totalorder %s144, 0
    %s147 = sadd.s32 %s146, 1
    %s148 = scalar_select %p145, %s146, %s147
    %p151 = pneg %p145
    %p152 = scmp.eq.s32.totalorder %s11, 1
    %p153 = por %p151, %p152
    %p154 = scmp.ne.s32.totalorder %s146, %s149
    %p155 = scmp.eq.s32.totalorder %s11, 0
    %p156 = por %p154, %p155
    %p157 = scmp.ne.s32.totalorder %s146, %s149
    %p158 = scmp.eq.s32.totalorder %s16, 1
    %p159 = por %p157, %p158
    %p160 = scmp.ne.s32.totalorder %s149, %s150
    %p161 = scmp.eq.s32.totalorder %s16, 0
    %p162 = por %p160, %p161
    %p163 = scmp.ne.s32.totalorder %s149, %s150
    %p164 = scmp.eq.s32.totalorder %s17, 1
    %p165 = por %p163, %p164
    %p167 = scmp.ne.s32.totalorder %s150, %s166
    %p168 = scmp.eq.s32.totalorder %s17, 0
    %p169 = por %p167, %p168
    %p170 = scmp.le.s32.totalorder 1, %s11
    %p171 = scmp.lt.s32.totalorder %s11, 3
    %p172 = pnand %p170, %p171
    %p173 = pneg %p172
    // Predicated region
    $region9: #{multibox_loss_pallas.1} parent=5 // pred_check
      _
    $region10: #{multibox_loss_pallas.1} parent=5 // pred_check_branch
      %175 = sbr.rel (%p172) target = $region12
    $region11: #{multibox_loss_pallas.1} parent=5 // pred_region
      %s176 = ssub.s32 %s11, 1
      // Predicated region
      $region13: #{multibox_loss_pallas.1} parent=11 // pred_check
        %p177 = pneg %p84
      $region14: #{multibox_loss_pallas.1} parent=11 // pred_check_branch
        %179 = sbr.rel (%p177) target = $region16
      $region15: #{multibox_loss_pallas.1} parent=11 // pred_region
        _
      $region16: #{multibox_loss_pallas.1} parent=11 // pred_fallthru
        _
    $region12: #{multibox_loss_pallas.1} parent=5 // pred_fallthru
      _
    %p180 = scmp.lt.s32.totalorder %s11, 2
    // Predicated region
    $region17: #{multibox_loss_pallas.1} parent=5 // pred_check
      %p181 = pneg %p180
    $region18: #{multibox_loss_pallas.1} parent=5 // pred_check_branch
      %183 = sbr.rel (%p181) target = $region20
    $region19: #{multibox_loss_pallas.1} parent=5 // pred_region
      // Predicated region
      $region21: #{multibox_loss_pallas.1} parent=19 // pred_check
        %p184 = pneg %p31
      $region22: #{multibox_loss_pallas.1} parent=19 // pred_check_branch
        %186 = sbr.rel (%p184) target = $region24
      $region23: #{multibox_loss_pallas.1} parent=19 // pred_region
        %p187 = scmp.lt.s32.totalorder %s11, 1
        %s188 = scalar_select %p187, %s11, 1
        %s189 = smul.addr %s188, 4
        %s190 = scalar_lea.vmem %s0, %s189
      $region24: #{multibox_loss_pallas.1} parent=19 // pred_fallthru
        _
      // Predicated region
      $region25: #{multibox_loss_pallas.1} parent=19 // pred_check
        %p191 = pneg %p57
      $region26: #{multibox_loss_pallas.1} parent=19 // pred_check_branch
        %193 = sbr.rel (%p191) target = $region28
      $region27: #{multibox_loss_pallas.1} parent=19 // pred_region
        %p194 = scmp.lt.s32.totalorder %s11, 1
        %s195 = scalar_select %p194, %s11, 1
        %s196 = smul.addr %s195, 8
        %s197 = scalar_lea.vmem %s1, %s196
      $region28: #{multibox_loss_pallas.1} parent=19 // pred_fallthru
        _
      // Predicated region
      $region29: #{multibox_loss_pallas.1} parent=19 // pred_check
        %p198 = pneg %p104
      $region30: #{multibox_loss_pallas.1} parent=19 // pred_check_branch
        %200 = sbr.rel (%p198) target = $region32
      $region31: #{multibox_loss_pallas.1} parent=19 // pred_region
        %p201 = scmp.lt.s32.totalorder %s11, 1
        %s202 = scalar_select %p201, %s11, 1
        %s203 = smul.addr %s202, 8
        %s204 = scalar_lea.vmem %s3, %s203
      $region32: #{multibox_loss_pallas.1} parent=19 // pred_fallthru
        _
      // Predicated region
      $region33: #{multibox_loss_pallas.1} parent=19 // pred_check
        %p205 = pneg %p130
      $region34: #{multibox_loss_pallas.1} parent=19 // pred_check_branch
        %207 = sbr.rel (%p205) target = $region36
      $region35: #{multibox_loss_pallas.1} parent=19 // pred_region
        %p208 = scmp.lt.s32.totalorder %s11, 1
        %s209 = scalar_select %p208, %s11, 1
        %s210 = smul.addr %s209, 8
        %s211 = scalar_lea.vmem %s4, %s210
      $region36: #{multibox_loss_pallas.1} parent=19 // pred_fallthru
        _
    $region20: #{multibox_loss_pallas.1} parent=5 // pred_fallthru
      _
    %p212 = scmp.le.s32.totalorder 1, %s11
    %p213 = scmp.lt.s32.totalorder %s11, 3
    %p214 = pnand %p212, %p213
    %p215 = pneg %p214
    // Predicated region
    $region37: #{multibox_loss_pallas.1} parent=5 // pred_check
      _
    $region38: #{multibox_loss_pallas.1} parent=5 // pred_check_branch
      %217 = sbr.rel (%p214) target = $region40
    $region39: #{multibox_loss_pallas.1} parent=5 // pred_region
      %s218 = ssub.s32 %s11, 1
      %p219 = scmp.lt.s32.totalorder %s16, 1
      %s220 = scalar_select %p219, %s16, 1
      %s221 = smul.addr %s220, 4
      %s222 = scalar_lea.vmem %s0, %s221
      %p223 = pneg %p37
      %p224 = pneg %p34
      %p225 = scmp.lt.s32.totalorder %s16, 1
      %s226 = scalar_select %p225, %s16, 1
      %s227 = smul.addr %s226, 8
      %s228 = scalar_lea.vmem %s1, %s227
      %p229 = pneg %p63
      %p230 = pneg %p60
      %p231 = pneg %p84
      %p232 = pneg %p81
      %p233 = scmp.lt.s32.totalorder %s16, 1
      %s234 = scalar_select %p233, %s16, 1
      %s235 = smul.addr %s234, 8
      %s236 = scalar_lea.vmem %s3, %s235
      %p237 = pneg %p110
      %p238 = pneg %p107
      %p239 = scmp.lt.s32.totalorder %s16, 1
      %s240 = scalar_select %p239, %s16, 1
      %s241 = smul.addr %s240, 8
      %s242 = scalar_lea.vmem %s4, %s241
      %p243 = pneg %p136
      %p244 = pneg %p133
      %p245 = pneg %p162
      %p246 = pneg %p159
      %p247 = scmp.lt.s32.totalorder %s16, 1
      %s248 = scalar_select %p247, %s16, 1
      %s249 = smul.addr %s248, 8
      %s250 = scalar_lea.vmem %s5, %s249
      %p251 = scmp.lt.s32.totalorder %s16, 1
      %s252 = scalar_select %p251, %s16, 1
      %s253 = smul.addr %s252, 4
      %s254 = scalar_lea.vmem %s0, %s253
      %p255 = scmp.lt.s32.totalorder %s16, 1
      %s256 = scalar_select %p255, %s16, 1
      %s257 = smul.addr %s256, 8
      %s258 = scalar_lea.vmem %s1, %s257
      %p259 = scmp.lt.s32.totalorder %s16, 1
      %s260 = scalar_select %p259, %s16, 1
      %s261 = smul.addr %s260, 8
      %s262 = scalar_lea.vmem %s3, %s261
      %p263 = scmp.lt.s32.totalorder %s16, 1
      %s264 = scalar_select %p263, %s16, 1
      %s265 = smul.addr %s264, 8
      %s266 = scalar_lea.vmem %s4, %s265
      %p267 = scmp.lt.s32.totalorder %s16, 1
      %s268 = scalar_select %p267, %s16, 1
      %s269 = smul.addr %s268, 8
      %s270 = scalar_lea.vmem %s5, %s269
      %v271 = vld [vmem:[%s2] sm:$0xf]
      %v272 = vmul.f32 %v271, 0.5
      %v274 = vrot.slane %v272, 2
      %v276 = vsub.f32 %v271, %v274
      %v277 = vadd.f32 %v271, %v274
      %v278 = vsub.f32 %v277, %v276
      %v280 = vrot.slane %v278, 1
      %v282 = vmul.f32 %v278, %v280
      %v283 = vld [vmem:[%s262] sm:$0xff]
      %285 = vrot.lane.b32.xlu0 %v283, 2
      %v286 = vpop.permute.xlu0 %285
      %v288 = vsub.f32 %v283, %v286
      %290 = vrot.lane.b32.xlu0 %v288, 127
      %v291 = vpop.permute.xlu0 %290
      %v293 = vmul.f32 %v288, %v291
      %v294 = vlaneseq
      %v295 = vshrl.u32 %v294, 7
      %v296 = vsub.s32 0, %v295
      %v297 = vrot.slane %v276, %v296
      %298 = vset.pattern.permute.xlu0 0
      %299 = vperm.xlu0 %298, %v283
      %v300 = vpop.permute.xlu0 %299
      %v302 = vmax.f32 %v297, %v300
      %v303 = vlaneseq
      %v304 = vshrl.u32 %v303, 7
      %v305 = vsub.s32 1, %v304
      %v306 = vrot.slane %v276, %v305
      %307 = vset.pattern.permute.xlu0 1
      %308 = vperm.xlu0 %307, %v283
      %v309 = vpop.permute.xlu0 %308
      %v311 = vmax.f32 %v306, %v309
      %v312 = vlaneseq
      %v313 = vshrl.u32 %v312, 7
      %v314 = vsub.s32 0, %v313
      %v315 = vrot.slane %v277, %v314
      %316 = vset.pattern.permute.xlu0 2
      %317 = vperm.xlu0 %316, %v283
      %v318 = vpop.permute.xlu0 %317
      %v320 = vmin.f32 %v315, %v318
      %v321 = vlaneseq
      %v322 = vshrl.u32 %v321, 7
      %v323 = vsub.s32 1, %v322
      %v324 = vrot.slane %v277, %v323
      %325 = vset.pattern.permute.xlu0 3
      %326 = vperm.xlu0 %325, %v283
      %v327 = vpop.permute.xlu0 %326
      %v329 = vmin.f32 %v324, %v327
      %v330 = vsub.f32 %v320, %v302
      %v331 = vmax.f32 %v330, 0.0
      %v332 = vsub.f32 %v329, %v311
      %v333 = vmax.f32 %v332, 0.0
      %v334 = vmul.f32 %v331, %v333
      %v335 = vlaneseq
      %v336 = vshrl.u32 %v335, 7
      %v337 = vsub.s32 0, %v336
      %v338 = vrot.slane %v282, %v337
      %340 = vset.pattern.permute.xlu0 2
      %341 = vperm.xlu0 %340, %v293
      %v342 = vpop.permute.xlu0 %341
      %v344 = vadd.f32 %v338, %v342
      %v345 = vsub.f32 %v344, %v334
      %v346 = vadd.f32 %v345, 1e-12
      %v347 = vrcp.pop %v346
      %v348 = vmul.f32 %v334, %v347
      %v349 = vlaneseq
      %v350 = vshrl.u32 %v349, 7
      %v351 = vcvt.s32.f32 %v350
      %v352 = vlaneseq
      %v353 = vand.u32 %v352, 127
      %v354 = vcvt.s32.f32 %v353
      %v355 = vrot.slane %v348, 4
      %v356 = vmax.f32 %v348, %v355
      %v357 = vrot.slane %v356, 2
      %v358 = vmax.f32 %v356, %v357
      %v359 = vrot.slane %v358, 1
      %v360 = vmax.f32 %v358, %v359
      %vm361 = vcmp.eq.f32.partialorder %v348, %v360
      %v362 = vsel %vm361, %v351, 8.0
      %v363 = vrot.slane %v362, 4
      %v364 = vmin.f32 %v362, %v363
      %v365 = vrot.slane %v364, 2
      %v366 = vmin.f32 %v364, %v365
      %v367 = vrot.slane %v366, 1
      %v368 = vmin.f32 %v366, %v367
      %369 = vmax.xlane.f32.xlu0 %v348
      %v370 = vpop.xlane.xlu0 %369
      %vm371 = vcmp.eq.f32.partialorder %v348, %v370
      %v372 = vsel %vm371, %v354, 128.0
      %373 = vmin.xlane.f32.xlu0 %v372
      %v374 = vpop.xlane.xlu0 %373
      %vm375 = vcmp.eq.f32.partialorder %v354, %v374
      %v376 = vsel %vm375, 1, 0
      %v377 = vcvt.s32.f32 %v376
      %v378 = vrot.slane %v377, 4
      %v379 = vmax.f32 %v377, %v378
      %v380 = vrot.slane %v379, 2
      %v381 = vmax.f32 %v379, %v380
      %v382 = vrot.slane %v381, 1
      %v383 = vmax.f32 %v381, %v382
      %vm384 = vcmp.gt.f32.partialorder %v383, 0.0
      %v385 = vsel %vm375, %v351, -1.0
      %v386 = vrot.slane %v385, 4
      %v387 = vmax.f32 %v385, %v386
      %v388 = vrot.slane %v387, 2
      %v389 = vmax.f32 %v387, %v388
      %v390 = vrot.slane %v389, 1
      %v391 = vmax.f32 %v389, %v390
      %v392 = vsel %vm384, 2.0, %v360
      %v393 = vsel %vm384, %v391, %v368
      %vm394 = vcmp.eq.f32.partialorder %v351, %v393
      %v395 = vsel %vm394, 1, 0
      %v396 = vcvt.s32.f32 %v395
      %v397 = vld [vmem:[%s266] sm:$0xff]
      %vm398 = vcmask 64512
      %v400 = vsel %vm398, %v397, 0
      %402 = vmatprep.subr.mxu0 0.0
      %v403 = vand.u32 %v396, 4294901760
      %404 = vmatpush1.msra.mxu0 %v403
      %405 = vmatprep.subr.mxu0 0.0
      %406 = vmatpush1.msra.mxu0 0.0
      %407 = vmatprep.subr.mxu0 0.0
      %408 = vmatpush1.msra.mxu0 0.0
      %409 = vmatprep.subr.mxu0 0.0
      %410 = vmatpush1.msra.mxu0 0.0
      %411 = vmatprep.subr.mxu0 0.0
      %412 = vmatpush1.msra.mxu0 0.0
      %413 = vmatprep.subr.mxu0 0.0
      %414 = vmatpush1.msra.mxu0 0.0
      %415 = vmatprep.subr.mxu0 0.0
      %416 = vmatpush1.msra.mxu0 0.0
      %417 = vmatprep.subr.mxu0 0.0
      %418 = vmatpush1.msra.mxu0 0.0
      %419 = vmatprep.subr.mxu0 0.0
      %420 = vmatpush1.msra.mxu0 0.0
      %421 = vmatprep.subr.mxu0 0.0
      %422 = vmatpush1.msra.mxu0 0.0
      %423 = vmatprep.subr.mxu0 0.0
      %424 = vmatpush1.msra.mxu0 0.0
      %425 = vmatprep.subr.mxu0 0.0
      %426 = vmatpush1.msra.mxu0 0.0
      %427 = vmatprep.subr.mxu0 0.0
      %428 = vmatpush1.msra.mxu0 0.0
      %429 = vmatprep.subr.mxu0 0.0
      %430 = vmatpush1.msra.mxu0 0.0
      %431 = vmatprep.subr.mxu0 0.0
      %432 = vmatpush1.msra.mxu0 0.0
      %433 = vmatprep.subr.mxu0 0.0
      %434 = vmatpush1.msra.mxu0 0.0
      %435 = vmatprep.subr.mxu0 0.0
      %436 = vmatpush1.msra.mxu0 0.0
      %437 = vmatprep.subr.mxu0 0.0
      %438 = vmatpush1.msra.mxu0 0.0
      %439 = vmatprep.subr.mxu0 0.0
      %440 = vmatpush1.msra.mxu0 0.0
      %441 = vmatprep.subr.mxu0 0.0
      %442 = vmatpush1.msra.mxu0 0.0
      %443 = vmatprep.subr.mxu0 0.0
      %444 = vmatpush1.msra.mxu0 0.0
      %445 = vmatprep.subr.mxu0 0.0
      %446 = vmatpush1.msra.mxu0 0.0
      %447 = vmatprep.subr.mxu0 0.0
      %448 = vmatpush1.msra.mxu0 0.0
      %449 = vmatprep.subr.mxu0 0.0
      %450 = vmatpush1.msra.mxu0 0.0
      %451 = vmatprep.subr.mxu0 0.0
      %452 = vmatpush1.msra.mxu0 0.0
      %453 = vmatprep.subr.mxu0 0.0
      %454 = vmatpush1.msra.mxu0 0.0
      %455 = vmatprep.subr.mxu0 0.0
      %456 = vmatpush1.msra.mxu0 0.0
      %457 = vmatprep.subr.mxu0 0.0
      %458 = vmatpush1.msra.mxu0 0.0
      %459 = vmatprep.subr.mxu0 0.0
      %460 = vmatpush1.msra.mxu0 0.0
      %461 = vmatprep.subr.mxu0 0.0
      %462 = vmatpush1.msra.mxu0 0.0
      %463 = vmatprep.subr.mxu0 0.0
      %464 = vmatpush1.msra.mxu0 0.0
      %465 = vmatprep.subr.mxu0 0.0
      %466 = vmatpush1.msra.mxu0 0.0
      %467 = vmatprep.mubr.f32.mxu0 0.0
      %v468 = vand.u32 %v400, 4294901760
      %v469 = vsub.f32 %v400, %v468
      %v470 = vand.u32 %v469, 4294901760
      %v471 = vsub.f32 %v469, %v470
      %v472 = vand.u32 %v471, 4294901760
      %473 = vmatmul.mubr.f32.gmra.mrb[0].mxu0 %v472
      %v474 = vpop.f32.mrb[0].mxu0
      %v475 = vadd.f32 0.0, %v474
      %v476 = vpop.f32.mrb[0].mxu0
      %477 = vdwg.mxu0
      %478 = vmatprep.subr.mxu0 0.0
      %v479 = vand.u32 %v396, 4294901760
      %v480 = vsub.f32 %v396, %v479
      %v481 = vand.u32 %v480, 4294901760
      %v482 = vsub.f32 %v480, %v481
      %v483 = vand.u32 %v482, 4294901760
      %484 = vmatpush1.msra.mxu0 %v483
      %485 = vmatprep.subr.mxu0 0.0
      %486 = vmatpush1.msra.mxu0 0.0
      %487 = vmatprep.subr.mxu0 0.0
      %488 = vmatpush1.msra.mxu0 0.0
      %489 = vmatprep.subr.mxu0 0.0
      %490 = vmatpush1.msra.mxu0 0.0
      %491 = vmatprep.subr.mxu0 0.0
      %492 = vmatpush1.msra.mxu0 0.0
      %493 = vmatprep.subr.mxu0 0.0
      %494 = vmatpush1.msra.mxu0 0.0
      %495 = vmatprep.subr.mxu0 0.0
      %496 = vmatpush1.msra.mxu0 0.0
      %497 = vmatprep.subr.mxu0 0.0
      %498 = vmatpush1.msra.mxu0 0.0
      %499 = vmatprep.subr.mxu0 0.0
      %500 = vmatpush1.msra.mxu0 0.0
      %501 = vmatprep.subr.mxu0 0.0
      %502 = vmatpush1.msra.mxu0 0.0
      %503 = vmatprep.subr.mxu0 0.0
      %504 = vmatpush1.msra.mxu0 0.0
      %505 = vmatprep.subr.mxu0 0.0
      %506 = vmatpush1.msra.mxu0 0.0
      %507 = vmatprep.subr.mxu0 0.0
      %508 = vmatpush1.msra.mxu0 0.0
      %509 = vmatprep.subr.mxu0 0.0
      %510 = vmatpush1.msra.mxu0 0.0
      %511 = vmatprep.subr.mxu0 0.0
      %512 = vmatpush1.msra.mxu0 0.0
      %513 = vmatprep.subr.mxu0 0.0
      %514 = vmatpush1.msra.mxu0 0.0
      %515 = vmatprep.subr.mxu0 0.0
      %516 = vmatpush1.msra.mxu0 0.0
      %517 = vmatprep.subr.mxu0 0.0
      %518 = vmatpush1.msra.mxu0 0.0
      %519 = vmatprep.subr.mxu0 0.0
      %520 = vmatpush1.msra.mxu0 0.0
      %521 = vmatprep.subr.mxu0 0.0
      %522 = vmatpush1.msra.mxu0 0.0
      %523 = vmatprep.subr.mxu0 0.0
      %524 = vmatpush1.msra.mxu0 0.0
      %525 = vmatprep.subr.mxu0 0.0
      %526 = vmatpush1.msra.mxu0 0.0
      %527 = vmatprep.subr.mxu0 0.0
      %528 = vmatpush1.msra.mxu0 0.0
      %529 = vmatprep.subr.mxu0 0.0
      %530 = vmatpush1.msra.mxu0 0.0
      %531 = vmatprep.subr.mxu0 0.0
      %532 = vmatpush1.msra.mxu0 0.0
      %533 = vmatprep.subr.mxu0 0.0
      %534 = vmatpush1.msra.mxu0 0.0
      %535 = vmatprep.subr.mxu0 0.0
      %536 = vmatpush1.msra.mxu0 0.0
      %537 = vmatprep.subr.mxu0 0.0
      %538 = vmatpush1.msra.mxu0 0.0
      %539 = vmatprep.subr.mxu0 0.0
      %540 = vmatpush1.msra.mxu0 0.0
      %541 = vmatprep.subr.mxu0 0.0
      %542 = vmatpush1.msra.mxu0 0.0
      %543 = vmatprep.subr.mxu0 0.0
      %544 = vmatpush1.msra.mxu0 0.0
      %545 = vmatprep.subr.mxu0 0.0
      %546 = vmatpush1.msra.mxu0 0.0
      %547 = vmatprep.mubr.f32.mxu0 0.0
      %v548 = vand.u32 %v400, 4294901760
      %549 = vmatmul.mubr.f32.gmra.mrb[0].mxu0 %v548
      %v550 = vpop.f32.mrb[0].mxu0
      %v551 = vadd.f32 %v475, %v550
      %v552 = vpop.f32.mrb[0].mxu0
      %553 = vdwg.mxu0
      %554 = vmatprep.subr.mxu0 0.0
      %v555 = vand.u32 %v396, 4294901760
      %v556 = vsub.f32 %v396, %v555
      %557 = vmatpush1.msra.mxu0 %v556
      %558 = vmatprep.subr.mxu0 0.0
      %559 = vmatpush1.msra.mxu0 0.0
      %560 = vmatprep.subr.mxu0 0.0
      %561 = vmatpush1.msra.mxu0 0.0
      %562 = vmatprep.subr.mxu0 0.0
      %563 = vmatpush1.msra.mxu0 0.0
      %564 = vmatprep.subr.mxu0 0.0
      %565 = vmatpush1.msra.mxu0 0.0
      %566 = vmatprep.subr.mxu0 0.0
      %567 = vmatpush1.msra.mxu0 0.0
      %568 = vmatprep.subr.mxu0 0.0
      %569 = vmatpush1.msra.mxu0 0.0
      %570 = vmatprep.subr.mxu0 0.0
      %571 = vmatpush1.msra.mxu0 0.0
      %572 = vmatprep.subr.mxu0 0.0
      %573 = vmatpush1.msra.mxu0 0.0
      %574 = vmatprep.subr.mxu0 0.0
      %575 = vmatpush1.msra.mxu0 0.0
      %576 = vmatprep.subr.mxu0 0.0
      %577 = vmatpush1.msra.mxu0 0.0
      %578 = vmatprep.subr.mxu0 0.0
      %579 = vmatpush1.msra.mxu0 0.0
      %580 = vmatprep.subr.mxu0 0.0
      %581 = vmatpush1.msra.mxu0 0.0
      %582 = vmatprep.subr.mxu0 0.0
      %583 = vmatpush1.msra.mxu0 0.0
      %584 = vmatprep.subr.mxu0 0.0
      %585 = vmatpush1.msra.mxu0 0.0
      %586 = vmatprep.subr.mxu0 0.0
      %587 = vmatpush1.msra.mxu0 0.0
      %588 = vmatprep.subr.mxu0 0.0
      %589 = vmatpush1.msra.mxu0 0.0
      %590 = vmatprep.subr.mxu0 0.0
      %591 = vmatpush1.msra.mxu0 0.0
      %592 = vmatprep.subr.mxu0 0.0
      %593 = vmatpush1.msra.mxu0 0.0
      %594 = vmatprep.subr.mxu0 0.0
      %595 = vmatpush1.msra.mxu0 0.0
      %596 = vmatprep.subr.mxu0 0.0
      %597 = vmatpush1.msra.mxu0 0.0
      %598 = vmatprep.subr.mxu0 0.0
      %599 = vmatpush1.msra.mxu0 0.0
      %600 = vmatprep.subr.mxu0 0.0
      %601 = vmatpush1.msra.mxu0 0.0
      %602 = vmatprep.subr.mxu0 0.0
      %603 = vmatpush1.msra.mxu0 0.0
      %604 = vmatprep.subr.mxu0 0.0
      %605 = vmatpush1.msra.mxu0 0.0
      %606 = vmatprep.subr.mxu0 0.0
      %607 = vmatpush1.msra.mxu0 0.0
      %608 = vmatprep.subr.mxu0 0.0
      %609 = vmatpush1.msra.mxu0 0.0
      %610 = vmatprep.subr.mxu0 0.0
      %611 = vmatpush1.msra.mxu0 0.0
      %612 = vmatprep.subr.mxu0 0.0
      %613 = vmatpush1.msra.mxu0 0.0
      %614 = vmatprep.subr.mxu0 0.0
      %615 = vmatpush1.msra.mxu0 0.0
      %616 = vmatprep.subr.mxu0 0.0
      %617 = vmatpush1.msra.mxu0 0.0
      %618 = vmatprep.subr.mxu0 0.0
      %619 = vmatpush1.msra.mxu0 0.0
      %620 = vmatprep.mubr.f32.mxu0 0.0
      %v621 = vand.u32 %v400, 4294901760
      %v622 = vsub.f32 %v400, %v621
      %623 = vmatmul.mubr.f32.gmra.mrb[0].mxu0 %v622
      %v624 = vpop.f32.mrb[0].mxu0
      %v625 = vadd.f32 %v551, %v624
      %v626 = vpop.f32.mrb[0].mxu0
      %627 = vdwg.mxu0
      %628 = vmatprep.subr.mxu0 0.0
      %v629 = vand.u32 %v396, 4294901760
      %630 = vmatpush1.msra.mxu0 %v629
      %631 = vmatprep.subr.mxu0 0.0
      %632 = vmatpush1.msra.mxu0 0.0
      %633 = vmatprep.subr.mxu0 0.0
      %634 = vmatpush1.msra.mxu0 0.0
      %635 = vmatprep.subr.mxu0 0.0
      %636 = vmatpush1.msra.mxu0 0.0
      %637 = vmatprep.subr.mxu0 0.0
      %638 = vmatpush1.msra.mxu0 0.0
      %639 = vmatprep.subr.mxu0 0.0
      %640 = vmatpush1.msra.mxu0 0.0
      %641 = vmatprep.subr.mxu0 0.0
      %642 = vmatpush1.msra.mxu0 0.0
      %643 = vmatprep.subr.mxu0 0.0
      %644 = vmatpush1.msra.mxu0 0.0
      %645 = vmatprep.subr.mxu0 0.0
      %646 = vmatpush1.msra.mxu0 0.0
      %647 = vmatprep.subr.mxu0 0.0
      %648 = vmatpush1.msra.mxu0 0.0
      %649 = vmatprep.subr.mxu0 0.0
      %650 = vmatpush1.msra.mxu0 0.0
      %651 = vmatprep.subr.mxu0 0.0
      %652 = vmatpush1.msra.mxu0 0.0
      %653 = vmatprep.subr.mxu0 0.0
      %654 = vmatpush1.msra.mxu0 0.0
      %655 = vmatprep.subr.mxu0 0.0
      %656 = vmatpush1.msra.mxu0 0.0
      %657 = vmatprep.subr.mxu0 0.0
      %658 = vmatpush1.msra.mxu0 0.0
      %659 = vmatprep.subr.mxu0 0.0
      %660 = vmatpush1.msra.mxu0 0.0
      %661 = vmatprep.subr.mxu0 0.0
      %662 = vmatpush1.msra.mxu0 0.0
      %663 = vmatprep.subr.mxu0 0.0
      %664 = vmatpush1.msra.mxu0 0.0
      %665 = vmatprep.subr.mxu0 0.0
      %666 = vmatpush1.msra.mxu0 0.0
      %667 = vmatprep.subr.mxu0 0.0
      %668 = vmatpush1.msra.mxu0 0.0
      %669 = vmatprep.subr.mxu0 0.0
      %670 = vmatpush1.msra.mxu0 0.0
      %671 = vmatprep.subr.mxu0 0.0
      %672 = vmatpush1.msra.mxu0 0.0
      %673 = vmatprep.subr.mxu0 0.0
      %674 = vmatpush1.msra.mxu0 0.0
      %675 = vmatprep.subr.mxu0 0.0
      %676 = vmatpush1.msra.mxu0 0.0
      %677 = vmatprep.subr.mxu0 0.0
      %678 = vmatpush1.msra.mxu0 0.0
      %679 = vmatprep.subr.mxu0 0.0
      %680 = vmatpush1.msra.mxu0 0.0
      %681 = vmatprep.subr.mxu0 0.0
      %682 = vmatpush1.msra.mxu0 0.0
      %683 = vmatprep.subr.mxu0 0.0
      %684 = vmatpush1.msra.mxu0 0.0
      %685 = vmatprep.subr.mxu0 0.0
      %686 = vmatpush1.msra.mxu0 0.0
      %687 = vmatprep.subr.mxu0 0.0
      %688 = vmatpush1.msra.mxu0 0.0
      %689 = vmatprep.subr.mxu0 0.0
      %690 = vmatpush1.msra.mxu0 0.0
      %691 = vmatprep.subr.mxu0 0.0
      %692 = vmatpush1.msra.mxu0 0.0
      %693 = vmatprep.mubr.f32.mxu0 0.0
      %v694 = vand.u32 %v400, 4294901760
      %v695 = vsub.f32 %v400, %v694
      %v696 = vand.u32 %v695, 4294901760
      %697 = vmatmul.mubr.f32.gmra.mrb[0].mxu0 %v696
      %v698 = vpop.f32.mrb[0].mxu0
      %v699 = vadd.f32 %v625, %v698
      %v700 = vpop.f32.mrb[0].mxu0
      %701 = vdwg.mxu0
      %702 = vmatprep.subr.mxu0 0.0
      %v703 = vand.u32 %v396, 4294901760
      %v704 = vsub.f32 %v396, %v703
      %v705 = vand.u32 %v704, 4294901760
      %706 = vmatpush1.msra.mxu0 %v705
      %707 = vmatprep.subr.mxu0 0.0
      %708 = vmatpush1.msra.mxu0 0.0
      %709 = vmatprep.subr.mxu0 0.0
      %710 = vmatpush1.msra.mxu0 0.0
      %711 = vmatprep.subr.mxu0 0.0
      %712 = vmatpush1.msra.mxu0 0.0
      %713 = vmatprep.subr.mxu0 0.0
      %714 = vmatpush1.msra.mxu0 0.0
      %715 = vmatprep.subr.mxu0 0.0
      %716 = vmatpush1.msra.mxu0 0.0
      %717 = vmatprep.subr.mxu0 0.0
      %718 = vmatpush1.msra.mxu0 0.0
      %719 = vmatprep.subr.mxu0 0.0
      %720 = vmatpush1.msra.mxu0 0.0
      %721 = vmatprep.subr.mxu0 0.0
      %722 = vmatpush1.msra.mxu0 0.0
      %723 = vmatprep.subr.mxu0 0.0
      %724 = vmatpush1.msra.mxu0 0.0
      %725 = vmatprep.subr.mxu0 0.0
      %726 = vmatpush1.msra.mxu0 0.0
      %727 = vmatprep.subr.mxu0 0.0
      %728 = vmatpush1.msra.mxu0 0.0
      %729 = vmatprep.subr.mxu0 0.0
      %730 = vmatpush1.msra.mxu0 0.0
      %731 = vmatprep.subr.mxu0 0.0
      %732 = vmatpush1.msra.mxu0 0.0
      %733 = vmatprep.subr.mxu0 0.0
      %734 = vmatpush1.msra.mxu0 0.0
      %735 = vmatprep.subr.mxu0 0.0
      %736 = vmatpush1.msra.mxu0 0.0
      %737 = vmatprep.subr.mxu0 0.0
      %738 = vmatpush1.msra.mxu0 0.0
      %739 = vmatprep.subr.mxu0 0.0
      %740 = vmatpush1.msra.mxu0 0.0
      %741 = vmatprep.subr.mxu0 0.0
      %742 = vmatpush1.msra.mxu0 0.0
      %743 = vmatprep.subr.mxu0 0.0
      %744 = vmatpush1.msra.mxu0 0.0
      %745 = vmatprep.subr.mxu0 0.0
      %746 = vmatpush1.msra.mxu0 0.0
      %747 = vmatprep.subr.mxu0 0.0
      %748 = vmatpush1.msra.mxu0 0.0
      %749 = vmatprep.subr.mxu0 0.0
      %750 = vmatpush1.msra.mxu0 0.0
      %751 = vmatprep.subr.mxu0 0.0
      %752 = vmatpush1.msra.mxu0 0.0
      %753 = vmatprep.subr.mxu0 0.0
      %754 = vmatpush1.msra.mxu0 0.0
      %755 = vmatprep.subr.mxu0 0.0
      %756 = vmatpush1.msra.mxu0 0.0
      %757 = vmatprep.subr.mxu0 0.0
      %758 = vmatpush1.msra.mxu0 0.0
      %759 = vmatprep.subr.mxu0 0.0
      %760 = vmatpush1.msra.mxu0 0.0
      %761 = vmatprep.subr.mxu0 0.0
      %762 = vmatpush1.msra.mxu0 0.0
      %763 = vmatprep.subr.mxu0 0.0
      %764 = vmatpush1.msra.mxu0 0.0
      %765 = vmatprep.subr.mxu0 0.0
      %766 = vmatpush1.msra.mxu0 0.0
      %767 = vmatprep.subr.mxu0 0.0
      %768 = vmatpush1.msra.mxu0 0.0
      %769 = vmatprep.mubr.f32.mxu0 0.0
      %v770 = vand.u32 %v400, 4294901760
      %771 = vmatmul.mubr.f32.gmra.mrb[0].mxu0 %v770
      %v772 = vpop.f32.mrb[0].mxu0
      %v773 = vadd.f32 %v699, %v772
      %v774 = vpop.f32.mrb[0].mxu0
      %775 = vdwg.mxu0
      %776 = vmatprep.subr.mxu0 0.0
      %v777 = vand.u32 %v396, 4294901760
      %778 = vmatpush1.msra.mxu0 %v777
      %779 = vmatprep.subr.mxu0 0.0
      %780 = vmatpush1.msra.mxu0 0.0
      %781 = vmatprep.subr.mxu0 0.0
      %782 = vmatpush1.msra.mxu0 0.0
      %783 = vmatprep.subr.mxu0 0.0
      %784 = vmatpush1.msra.mxu0 0.0
      %785 = vmatprep.subr.mxu0 0.0
      %786 = vmatpush1.msra.mxu0 0.0
      %787 = vmatprep.subr.mxu0 0.0
      %788 = vmatpush1.msra.mxu0 0.0
      %789 = vmatprep.subr.mxu0 0.0
      %790 = vmatpush1.msra.mxu0 0.0
      %791 = vmatprep.subr.mxu0 0.0
      %792 = vmatpush1.msra.mxu0 0.0
      %793 = vmatprep.subr.mxu0 0.0
      %794 = vmatpush1.msra.mxu0 0.0
      %795 = vmatprep.subr.mxu0 0.0
      %796 = vmatpush1.msra.mxu0 0.0
      %797 = vmatprep.subr.mxu0 0.0
      %798 = vmatpush1.msra.mxu0 0.0
      %799 = vmatprep.subr.mxu0 0.0
      %800 = vmatpush1.msra.mxu0 0.0
      %801 = vmatprep.subr.mxu0 0.0
      %802 = vmatpush1.msra.mxu0 0.0
      %803 = vmatprep.subr.mxu0 0.0
      %804 = vmatpush1.msra.mxu0 0.0
      %805 = vmatprep.subr.mxu0 0.0
      %806 = vmatpush1.msra.mxu0 0.0
      %807 = vmatprep.subr.mxu0 0.0
      %808 = vmatpush1.msra.mxu0 0.0
      %809 = vmatprep.subr.mxu0 0.0
      %810 = vmatpush1.msra.mxu0 0.0
      %811 = vmatprep.subr.mxu0 0.0
      %812 = vmatpush1.msra.mxu0 0.0
      %813 = vmatprep.subr.mxu0 0.0
      %814 = vmatpush1.msra.mxu0 0.0
      %815 = vmatprep.subr.mxu0 0.0
      %816 = vmatpush1.msra.mxu0 0.0
      %817 = vmatprep.subr.mxu0 0.0
      %818 = vmatpush1.msra.mxu0 0.0
      %819 = vmatprep.subr.mxu0 0.0
      %820 = vmatpush1.msra.mxu0 0.0
      %821 = vmatprep.subr.mxu0 0.0
      %822 = vmatpush1.msra.mxu0 0.0
      %823 = vmatprep.subr.mxu0 0.0
      %824 = vmatpush1.msra.mxu0 0.0
      %825 = vmatprep.subr.mxu0 0.0
      %826 = vmatpush1.msra.mxu0 0.0
      %827 = vmatprep.subr.mxu0 0.0
      %828 = vmatpush1.msra.mxu0 0.0
      %829 = vmatprep.subr.mxu0 0.0
      %830 = vmatpush1.msra.mxu0 0.0
      %831 = vmatprep.subr.mxu0 0.0
      %832 = vmatpush1.msra.mxu0 0.0
      %833 = vmatprep.subr.mxu0 0.0
      %834 = vmatpush1.msra.mxu0 0.0
      %835 = vmatprep.subr.mxu0 0.0
      %836 = vmatpush1.msra.mxu0 0.0
      %837 = vmatprep.subr.mxu0 0.0
      %838 = vmatpush1.msra.mxu0 0.0
      %839 = vmatprep.subr.mxu0 0.0
      %840 = vmatpush1.msra.mxu0 0.0
      %841 = vmatprep.mubr.f32.mxu0 0.0
      %v842 = vand.u32 %v400, 4294901760
      %843 = vmatmul.mubr.f32.gmra.mrb[0].mxu0 %v842
      %v844 = vpop.f32.mrb[0].mxu0
      %v845 = vadd.f32 %v773, %v844
      %v846 = vpop.f32.mrb[0].mxu0
      %847 = vdwg.mxu0
      %vm848 = vcmp.lt.f32.partialorder %v392, 0.5
      %v849 = vsel %vm848, 0.0, %v845
      %vm850 = vcmp.gt.f32.partialorder %v849, 0.0
      %v851 = vsel %vm850, 1, 0
      %v852 = vcvt.s32.f32 %v851
      %v854 = vrot.slane %v852, 4
      %vm856 = vcmask 1040384
      %v857 = vsel %vm856, %v854, 0.0
      %858 = vadd.xlane.f32.xlu0 %v857
      %v859 = vpop.xlane.xlu0 %858
      %v860 = vrot.slane %v859, 4
      %v861 = vadd.f32 %v859, %v860
      %v862 = vrot.slane %v861, 2
      %v863 = vadd.f32 %v861, %v862
      %v864 = vrot.slane %v863, 1
      %v865 = vadd.f32 %v863, %v864
      %s866 = vtos %v865
      %v868 = vrot.slane %v845, 2
      %v870 = vadd.f32 %v845, %v868
      %v871 = vmul.f32 %v870, 0.5
      %v872 = vsub.f32 %v871, %v271
      %v873 = vmul.f32 %v271, 0.1
      %v875 = vrot.slane %v873, 2
      %v877 = vrcp.pop %v875
      %v878 = vmul.f32 %v872, %v877
      %v879 = vrot.slane %v845, 6
      %v881 = vsub.f32 %v845, %v879
      %v882 = vrcp.pop %v271
      %v883 = vmul.f32 %v881, %v882
      %v884 = vlog2.pop %v883
      %v885 = vmul.f32 %v884, 0.6931472
      %v886 = vrcp.pop 0.2
      %v887 = vmul.f32 %v885, %v886
      %vm888 = vcmask 1041408
      %v889 = vsel %vm888, %v878, %v887
      %vm890 = vcmask 1042432
      %v891 = vsel %vm890, %v889, %v887
      %v892 = vld [vmem:[%s254] sm:$0xf]
      %v893 = vsub.f32 %v892, %v891
      %v894 = vand.u32 2147483647, %v893
      %vm895 = vcmp.lt.f32.partialorder %v894, 1.0
      %v896 = vmul.f32 %v893, 0.5
      %v897 = vmul.f32 %v896, %v893
      %v898 = vsub.f32 %v894, 0.5
      %v899 = vsel %vm895, %v897, %v898
      %vm900 = vcmask 1043456
      %v901 = vsel %vm900, %v899, 0.0
      %v902 = vrot.slane %v901, 4
      %v903 = vadd.f32 %v901, %v902
      %v904 = vrot.slane %v903, 2
      %v905 = vadd.f32 %v903, %v904
      %v906 = vrot.slane %v905, 1
      %v907 = vadd.f32 %v905, %v906
      %v908 = vld [vmem:[%s258] sm:$0xff]
      %v909 = vrot.slane %v908, 4
      %v910 = vmax.f32 %v908, %v909
      %v911 = vrot.slane %v910, 2
      %v912 = vmax.f32 %v910, %v911
      %v913 = vrot.slane %v912, 1
      %v914 = vmax.f32 %v912, %v913
      %v915 = vsub.f32 %v908, %v914
      %v916 = vmul.f32 %v915, 1.442695
      %v917 = vpow.pop %v916
      %v918 = vrot.slane %v917, 4
      %v919 = vadd.f32 %v917, %v918
      %v920 = vrot.slane %v919, 2
      %v921 = vadd.f32 %v919, %v920
      %v922 = vrot.slane %v921, 1
      %v923 = vadd.f32 %v921, %v922
      %v924 = vlog2.pop %v923
      %v925 = vmul.f32 %v924, 0.6931472
      %v926 = vadd.f32 %v914, %v925
      %v927 = vadd.f32 %v849, 0.5
      %v928 = vcvt.f32.s32.to.zero.pseudo %v927
      %v929 = vlaneseq
      %v930 = vshrl.u32 %v929, 7
      %v931 = vsub.s32 4, %v930
      %v932 = vrot.slane %v928, %v931
      %vm933 = vcmp.eq.s32.totalorder %v350, %v932
      %v934 = vsel %vm933, %v908, 0.0
      %v935 = vrot.slane %v934, 4
      %v936 = vadd.f32 %v934, %v935
      %v937 = vrot.slane %v936, 2
      %v938 = vadd.f32 %v936, %v937
      %v939 = vrot.slane %v938, 1
      %v940 = vadd.f32 %v938, %v939
      %v941 = vsub.f32 %v926, %v940
      %vm942 = vmxor %vm850, 1
      %v943 = vsel %vm942, %v941, 0.0
      %s944 = smul.f32 %s866, 3.0
      %s945 = smin.f32 %s944, 127.0
      %vm946 = vcmask 1044484
      %v947 = vsel %vm946, %v943, -inf
      %948 = vmax.xlane.f32.xlu0 %v947
      %v949 = vpop.xlane.xlu0 %948
      %v950 = vrot.slane %v949, 4
      %v951 = vmax.f32 %v949, %v950
      %v952 = vrot.slane %v951, 2
      %v953 = vmax.f32 %v951, %v952
      %v954 = vrot.slane %v953, 1
      %v955 = vmax.f32 %v953, %v954
      %s956 = vtos %v955
      %s957 = sadd.f32 %s956, -1.0
      %s958 = smul.f32 %s957, 0.5
      %v959 = vstv %s958
      %vm960 = vcmp.gt.f32.partialorder %v943, %v959
      %v961 = vsel %vm960, 1, 0
      %v962 = vcvt.s32.f32 %v961
      %v964 = vrot.slane %v962, 4
      %v966 = vsel %vm856, %v964, 0.0
      %967 = vadd.xlane.f32.xlu0 %v966
      %v968 = vpop.xlane.xlu0 %967
      %v969 = vrot.slane %v968, 4
      %v970 = vadd.f32 %v968, %v969
      %v971 = vrot.slane %v970, 2
      %v972 = vadd.f32 %v970, %v971
      %v973 = vrot.slane %v972, 1
      %v974 = vadd.f32 %v972, %v973
      %s975 = vtos %v974
      %p976 = scmp.gt.f32.partialorder %s975, %s945
      %s977 = scalar_select %p976, %s958, -1.0
      %s978 = scalar_select %p976, %s956, %s958
      %s979 = sadd.f32 %s977, %s978
      %s980 = smul.f32 %s979, 0.5
      %v981 = vstv %s980
      %vm982 = vcmp.gt.f32.partialorder %v943, %v981
      %v983 = vsel %vm982, 1, 0
      %v984 = vcvt.s32.f32 %v983
      %v986 = vrot.slane %v984, 4
      %v988 = vsel %vm856, %v986, 0.0
      %989 = vadd.xlane.f32.xlu0 %v988
      %v990 = vpop.xlane.xlu0 %989
      %v991 = vrot.slane %v990, 4
      %v992 = vadd.f32 %v990, %v991
      %v993 = vrot.slane %v992, 2
      %v994 = vadd.f32 %v992, %v993
      %v995 = vrot.slane %v994, 1
      %v996 = vadd.f32 %v994, %v995
      %s997 = vtos %v996
      %p998 = scmp.gt.f32.partialorder %s997, %s945
      %s999 = scalar_select %p998, %s980, %s977
      %s1000 = scalar_select %p998, %s978, %s980
      %s1001 = sadd.f32 %s999, %s1000
      %s1002 = smul.f32 %s1001, 0.5
      %v1003 = vstv %s1002
      %vm1004 = vcmp.gt.f32.partialorder %v943, %v1003
      %v1005 = vsel %vm1004, 1, 0
      %v1006 = vcvt.s32.f32 %v1005
      %v1008 = vrot.slane %v1006, 4
      %v1010 = vsel %vm856, %v1008, 0.0
      %1011 = vadd.xlane.f32.xlu0 %v1010
      %v1012 = vpop.xlane.xlu0 %1011
      %v1013 = vrot.slane %v1012, 4
      %v1014 = vadd.f32 %v1012, %v1013
      %v1015 = vrot.slane %v1014, 2
      %v1016 = vadd.f32 %v1014, %v1015
      %v1017 = vrot.slane %v1016, 1
      %v1018 = vadd.f32 %v1016, %v1017
      %s1019 = vtos %v1018
      %p1020 = scmp.gt.f32.partialorder %s1019, %s945
      %s1021 = scalar_select %p1020, %s1002, %s999
      %s1022 = scalar_select %p1020, %s1000, %s1002
      %s1023 = sadd.f32 %s1021, %s1022
      %s1024 = smul.f32 %s1023, 0.5
      %v1025 = vstv %s1024
      %vm1026 = vcmp.gt.f32.partialorder %v943, %v1025
      %v1027 = vsel %vm1026, 1, 0
      %v1028 = vcvt.s32.f32 %v1027
      %v1030 = vrot.slane %v1028, 4
      %v1032 = vsel %vm856, %v1030, 0.0
      %1033 = vadd.xlane.f32.xlu0 %v1032
      %v1034 = vpop.xlane.xlu0 %1033
      %v1035 = vrot.slane %v1034, 4
      %v1036 = vadd.f32 %v1034, %v1035
      %v1037 = vrot.slane %v1036, 2
      %v1038 = vadd.f32 %v1036, %v1037
      %v1039 = vrot.slane %v1038, 1
      %v1040 = vadd.f32 %v1038, %v1039
      %s1041 = vtos %v1040
      %p1042 = scmp.gt.f32.partialorder %s1041, %s945
      %s1043 = scalar_select %p1042, %s1024, %s1021
      %s1044 = scalar_select %p1042, %s1022, %s1024
      %s1045 = sadd.f32 %s1043, %s1044
      %s1046 = smul.f32 %s1045, 0.5
      %v1047 = vstv %s1046
      %vm1048 = vcmp.gt.f32.partialorder %v943, %v1047
      %v1049 = vsel %vm1048, 1, 0
      %v1050 = vcvt.s32.f32 %v1049
      %v1052 = vrot.slane %v1050, 4
      %v1054 = vsel %vm856, %v1052, 0.0
      %1055 = vadd.xlane.f32.xlu0 %v1054
      %v1056 = vpop.xlane.xlu0 %1055
      %v1057 = vrot.slane %v1056, 4
      %v1058 = vadd.f32 %v1056, %v1057
      %v1059 = vrot.slane %v1058, 2
      %v1060 = vadd.f32 %v1058, %v1059
      %v1061 = vrot.slane %v1060, 1
      %v1062 = vadd.f32 %v1060, %v1061
      %s1063 = vtos %v1062
      %p1064 = scmp.gt.f32.partialorder %s1063, %s945
      %s1065 = scalar_select %p1064, %s1046, %s1043
      %s1066 = scalar_select %p1064, %s1044, %s1046
      %s1067 = sadd.f32 %s1065, %s1066
      %s1068 = smul.f32 %s1067, 0.5
      %v1069 = vstv %s1068
      %vm1070 = vcmp.gt.f32.partialorder %v943, %v1069
      %v1071 = vsel %vm1070, 1, 0
      %v1072 = vcvt.s32.f32 %v1071
      %v1074 = vrot.slane %v1072, 4
      %v1076 = vsel %vm856, %v1074, 0.0
      %1077 = vadd.xlane.f32.xlu0 %v1076
      %v1078 = vpop.xlane.xlu0 %1077
      %v1079 = vrot.slane %v1078, 4
      %v1080 = vadd.f32 %v1078, %v1079
      %v1081 = vrot.slane %v1080, 2
      %v1082 = vadd.f32 %v1080, %v1081
      %v1083 = vrot.slane %v1082, 1
      %v1084 = vadd.f32 %v1082, %v1083
      %s1085 = vtos %v1084
      %p1086 = scmp.gt.f32.partialorder %s1085, %s945
      %s1087 = scalar_select %p1086, %s1068, %s1065
      %s1088 = scalar_select %p1086, %s1066, %s1068
      %s1089 = sadd.f32 %s1087, %s1088
      %s1090 = smul.f32 %s1089, 0.5
      %v1091 = vstv %s1090
      %vm1092 = vcmp.gt.f32.partialorder %v943, %v1091
      %v1093 = vsel %vm1092, 1, 0
      %v1094 = vcvt.s32.f32 %v1093
      %v1096 = vrot.slane %v1094, 4
      %v1098 = vsel %vm856, %v1096, 0.0
      %1099 = vadd.xlane.f32.xlu0 %v1098
      %v1100 = vpop.xlane.xlu0 %1099
      %v1101 = vrot.slane %v1100, 4
      %v1102 = vadd.f32 %v1100, %v1101
      %v1103 = vrot.slane %v1102, 2
      %v1104 = vadd.f32 %v1102, %v1103
      %v1105 = vrot.slane %v1104, 1
      %v1106 = vadd.f32 %v1104, %v1105
      %s1107 = vtos %v1106
      %p1108 = scmp.gt.f32.partialorder %s1107, %s945
      %s1109 = scalar_select %p1108, %s1090, %s1087
      %s1110 = scalar_select %p1108, %s1088, %s1090
      %s1111 = sadd.f32 %s1109, %s1110
      %s1112 = smul.f32 %s1111, 0.5
      %v1113 = vstv %s1112
      %vm1114 = vcmp.gt.f32.partialorder %v943, %v1113
      %v1115 = vsel %vm1114, 1, 0
      %v1116 = vcvt.s32.f32 %v1115
      %v1118 = vrot.slane %v1116, 4
      %v1120 = vsel %vm856, %v1118, 0.0
      %1121 = vadd.xlane.f32.xlu0 %v1120
      %v1122 = vpop.xlane.xlu0 %1121
      %v1123 = vrot.slane %v1122, 4
      %v1124 = vadd.f32 %v1122, %v1123
      %v1125 = vrot.slane %v1124, 2
      %v1126 = vadd.f32 %v1124, %v1125
      %v1127 = vrot.slane %v1126, 1
      %v1128 = vadd.f32 %v1126, %v1127
      %s1129 = vtos %v1128
      %p1130 = scmp.gt.f32.partialorder %s1129, %s945
      %s1131 = scalar_select %p1130, %s1112, %s1109
      %s1132 = scalar_select %p1130, %s1110, %s1112
      %s1133 = sadd.f32 %s1131, %s1132
      %s1134 = smul.f32 %s1133, 0.5
      %v1135 = vstv %s1134
      %vm1136 = vcmp.gt.f32.partialorder %v943, %v1135
      %v1137 = vsel %vm1136, 1, 0
      %v1138 = vcvt.s32.f32 %v1137
      %v1140 = vrot.slane %v1138, 4
      %v1142 = vsel %vm856, %v1140, 0.0
      %1143 = vadd.xlane.f32.xlu0 %v1142
      %v1144 = vpop.xlane.xlu0 %1143
      %v1145 = vrot.slane %v1144, 4
      %v1146 = vadd.f32 %v1144, %v1145
      %v1147 = vrot.slane %v1146, 2
      %v1148 = vadd.f32 %v1146, %v1147
      %v1149 = vrot.slane %v1148, 1
      %v1150 = vadd.f32 %v1148, %v1149
      %s1151 = vtos %v1150
      %p1152 = scmp.gt.f32.partialorder %s1151, %s945
      %s1153 = scalar_select %p1152, %s1134, %s1131
      %s1154 = scalar_select %p1152, %s1132, %s1134
      %s1155 = sadd.f32 %s1153, %s1154
      %s1156 = smul.f32 %s1155, 0.5
      %v1157 = vstv %s1156
      %vm1158 = vcmp.gt.f32.partialorder %v943, %v1157
      %v1159 = vsel %vm1158, 1, 0
      %v1160 = vcvt.s32.f32 %v1159
      %v1162 = vrot.slane %v1160, 4
      %v1164 = vsel %vm856, %v1162, 0.0
      %1165 = vadd.xlane.f32.xlu0 %v1164
      %v1166 = vpop.xlane.xlu0 %1165
      %v1167 = vrot.slane %v1166, 4
      %v1168 = vadd.f32 %v1166, %v1167
      %v1169 = vrot.slane %v1168, 2
      %v1170 = vadd.f32 %v1168, %v1169
      %v1171 = vrot.slane %v1170, 1
      %v1172 = vadd.f32 %v1170, %v1171
      %s1173 = vtos %v1172
      %p1174 = scmp.gt.f32.partialorder %s1173, %s945
      %s1175 = scalar_select %p1174, %s1156, %s1153
      %s1176 = scalar_select %p1174, %s1154, %s1156
      %s1177 = sadd.f32 %s1175, %s1176
      %s1178 = smul.f32 %s1177, 0.5
      %v1179 = vstv %s1178
      %vm1180 = vcmp.gt.f32.partialorder %v943, %v1179
      %v1181 = vsel %vm1180, 1, 0
      %v1182 = vcvt.s32.f32 %v1181
      %v1184 = vrot.slane %v1182, 4
      %v1186 = vsel %vm856, %v1184, 0.0
      %1187 = vadd.xlane.f32.xlu0 %v1186
      %v1188 = vpop.xlane.xlu0 %1187
      %v1189 = vrot.slane %v1188, 4
      %v1190 = vadd.f32 %v1188, %v1189
      %v1191 = vrot.slane %v1190, 2
      %v1192 = vadd.f32 %v1190, %v1191
      %v1193 = vrot.slane %v1192, 1
      %v1194 = vadd.f32 %v1192, %v1193
      %s1195 = vtos %v1194
      %p1196 = scmp.gt.f32.partialorder %s1195, %s945
      %s1197 = scalar_select %p1196, %s1178, %s1175
      %s1198 = scalar_select %p1196, %s1176, %s1178
      %s1199 = sadd.f32 %s1197, %s1198
      %s1200 = smul.f32 %s1199, 0.5
      %v1201 = vstv %s1200
      %vm1202 = vcmp.gt.f32.partialorder %v943, %v1201
      %v1203 = vsel %vm1202, 1, 0
      %v1204 = vcvt.s32.f32 %v1203
      %v1206 = vrot.slane %v1204, 4
      %v1208 = vsel %vm856, %v1206, 0.0
      %1209 = vadd.xlane.f32.xlu0 %v1208
      %v1210 = vpop.xlane.xlu0 %1209
      %v1211 = vrot.slane %v1210, 4
      %v1212 = vadd.f32 %v1210, %v1211
      %v1213 = vrot.slane %v1212, 2
      %v1214 = vadd.f32 %v1212, %v1213
      %v1215 = vrot.slane %v1214, 1
      %v1216 = vadd.f32 %v1214, %v1215
      %s1217 = vtos %v1216
      %p1218 = scmp.gt.f32.partialorder %s1217, %s945
      %s1219 = scalar_select %p1218, %s1200, %s1197
      %s1220 = scalar_select %p1218, %s1198, %s1200
      %s1221 = sadd.f32 %s1219, %s1220
      %s1222 = smul.f32 %s1221, 0.5
      %v1223 = vstv %s1222
      %vm1224 = vcmp.gt.f32.partialorder %v943, %v1223
      %v1225 = vsel %vm1224, 1, 0
      %v1226 = vcvt.s32.f32 %v1225
      %v1228 = vrot.slane %v1226, 4
      %v1230 = vsel %vm856, %v1228, 0.0
      %1231 = vadd.xlane.f32.xlu0 %v1230
      %v1232 = vpop.xlane.xlu0 %1231
      %v1233 = vrot.slane %v1232, 4
      %v1234 = vadd.f32 %v1232, %v1233
      %v1235 = vrot.slane %v1234, 2
      %v1236 = vadd.f32 %v1234, %v1235
      %v1237 = vrot.slane %v1236, 1
      %v1238 = vadd.f32 %v1236, %v1237
      %s1239 = vtos %v1238
      %p1240 = scmp.gt.f32.partialorder %s1239, %s945
      %s1241 = scalar_select %p1240, %s1222, %s1219
      %s1242 = scalar_select %p1240, %s1220, %s1222
      %s1243 = sadd.f32 %s1241, %s1242
      %s1244 = smul.f32 %s1243, 0.5
      %v1245 = vstv %s1244
      %vm1246 = vcmp.gt.f32.partialorder %v943, %v1245
      %v1247 = vsel %vm1246, 1, 0
      %v1248 = vcvt.s32.f32 %v1247
      %v1250 = vrot.slane %v1248, 4
      %v1252 = vsel %vm856, %v1250, 0.0
      %1253 = vadd.xlane.f32.xlu0 %v1252
      %v1254 = vpop.xlane.xlu0 %1253
      %v1255 = vrot.slane %v1254, 4
      %v1256 = vadd.f32 %v1254, %v1255
      %v1257 = vrot.slane %v1256, 2
      %v1258 = vadd.f32 %v1256, %v1257
      %v1259 = vrot.slane %v1258, 1
      %v1260 = vadd.f32 %v1258, %v1259
      %s1261 = vtos %v1260
      %p1262 = scmp.gt.f32.partialorder %s1261, %s945
      %s1263 = scalar_select %p1262, %s1244, %s1241
      %s1264 = scalar_select %p1262, %s1242, %s1244
      %s1265 = sadd.f32 %s1263, %s1264
      %s1266 = smul.f32 %s1265, 0.5
      %v1267 = vstv %s1266
      %vm1268 = vcmp.gt.f32.partialorder %v943, %v1267
      %v1269 = vsel %vm1268, 1, 0
      %v1270 = vcvt.s32.f32 %v1269
      %v1272 = vrot.slane %v1270, 4
      %v1274 = vsel %vm856, %v1272, 0.0
      %1275 = vadd.xlane.f32.xlu0 %v1274
      %v1276 = vpop.xlane.xlu0 %1275
      %v1277 = vrot.slane %v1276, 4
      %v1278 = vadd.f32 %v1276, %v1277
      %v1279 = vrot.slane %v1278, 2
      %v1280 = vadd.f32 %v1278, %v1279
      %v1281 = vrot.slane %v1280, 1
      %v1282 = vadd.f32 %v1280, %v1281
      %s1283 = vtos %v1282
      %p1284 = scmp.gt.f32.partialorder %s1283, %s945
      %s1285 = scalar_select %p1284, %s1266, %s1263
      %s1286 = scalar_select %p1284, %s1264, %s1266
      %s1287 = sadd.f32 %s1285, %s1286
      %s1288 = smul.f32 %s1287, 0.5
      %v1289 = vstv %s1288
      %vm1290 = vcmp.gt.f32.partialorder %v943, %v1289
      %v1291 = vsel %vm1290, 1, 0
      %v1292 = vcvt.s32.f32 %v1291
      %v1294 = vrot.slane %v1292, 4
      %v1296 = vsel %vm856, %v1294, 0.0
      %1297 = vadd.xlane.f32.xlu0 %v1296
      %v1298 = vpop.xlane.xlu0 %1297
      %v1299 = vrot.slane %v1298, 4
      %v1300 = vadd.f32 %v1298, %v1299
      %v1301 = vrot.slane %v1300, 2
      %v1302 = vadd.f32 %v1300, %v1301
      %v1303 = vrot.slane %v1302, 1
      %v1304 = vadd.f32 %v1302, %v1303
      %s1305 = vtos %v1304
      %p1306 = scmp.gt.f32.partialorder %s1305, %s945
      %s1307 = scalar_select %p1306, %s1288, %s1285
      %s1308 = scalar_select %p1306, %s1286, %s1288
      %s1309 = sadd.f32 %s1307, %s1308
      %s1310 = smul.f32 %s1309, 0.5
      %v1311 = vstv %s1310
      %vm1312 = vcmp.gt.f32.partialorder %v943, %v1311
      %v1313 = vsel %vm1312, 1, 0
      %v1314 = vcvt.s32.f32 %v1313
      %v1316 = vrot.slane %v1314, 4
      %v1318 = vsel %vm856, %v1316, 0.0
      %1319 = vadd.xlane.f32.xlu0 %v1318
      %v1320 = vpop.xlane.xlu0 %1319
      %v1321 = vrot.slane %v1320, 4
      %v1322 = vadd.f32 %v1320, %v1321
      %v1323 = vrot.slane %v1322, 2
      %v1324 = vadd.f32 %v1322, %v1323
      %v1325 = vrot.slane %v1324, 1
      %v1326 = vadd.f32 %v1324, %v1325
      %s1327 = vtos %v1326
      %p1328 = scmp.gt.f32.partialorder %s1327, %s945
      %s1329 = scalar_select %p1328, %s1310, %s1307
      %s1330 = scalar_select %p1328, %s1308, %s1310
      %s1331 = sadd.f32 %s1329, %s1330
      %s1332 = smul.f32 %s1331, 0.5
      %v1333 = vstv %s1332
      %vm1334 = vcmp.gt.f32.partialorder %v943, %v1333
      %v1335 = vsel %vm1334, 1, 0
      %v1336 = vcvt.s32.f32 %v1335
      %v1338 = vrot.slane %v1336, 4
      %v1340 = vsel %vm856, %v1338, 0.0
      %1341 = vadd.xlane.f32.xlu0 %v1340
      %v1342 = vpop.xlane.xlu0 %1341
      %v1343 = vrot.slane %v1342, 4
      %v1344 = vadd.f32 %v1342, %v1343
      %v1345 = vrot.slane %v1344, 2
      %v1346 = vadd.f32 %v1344, %v1345
      %v1347 = vrot.slane %v1346, 1
      %v1348 = vadd.f32 %v1346, %v1347
      %s1349 = vtos %v1348
      %p1350 = scmp.gt.f32.partialorder %s1349, %s945
      %s1351 = scalar_select %p1350, %s1332, %s1329
      %s1352 = scalar_select %p1350, %s1330, %s1332
      %s1353 = sadd.f32 %s1351, %s1352
      %s1354 = smul.f32 %s1353, 0.5
      %v1355 = vstv %s1354
      %vm1356 = vcmp.gt.f32.partialorder %v943, %v1355
      %v1357 = vsel %vm1356, 1, 0
      %v1358 = vcvt.s32.f32 %v1357
      %v1360 = vrot.slane %v1358, 4
      %v1362 = vsel %vm856, %v1360, 0.0
      %1363 = vadd.xlane.f32.xlu0 %v1362
      %v1364 = vpop.xlane.xlu0 %1363
      %v1365 = vrot.slane %v1364, 4
      %v1366 = vadd.f32 %v1364, %v1365
      %v1367 = vrot.slane %v1366, 2
      %v1368 = vadd.f32 %v1366, %v1367
      %v1369 = vrot.slane %v1368, 1
      %v1370 = vadd.f32 %v1368, %v1369
      %s1371 = vtos %v1370
      %p1372 = scmp.gt.f32.partialorder %s1371, %s945
      %s1373 = scalar_select %p1372, %s1354, %s1351
      %s1374 = scalar_select %p1372, %s1352, %s1354
      %s1375 = sadd.f32 %s1373, %s1374
      %s1376 = smul.f32 %s1375, 0.5
      %v1377 = vstv %s1376
      %vm1378 = vcmp.gt.f32.partialorder %v943, %v1377
      %v1379 = vsel %vm1378, 1, 0
      %v1380 = vcvt.s32.f32 %v1379
      %v1382 = vrot.slane %v1380, 4
      %v1384 = vsel %vm856, %v1382, 0.0
      %1385 = vadd.xlane.f32.xlu0 %v1384
      %v1386 = vpop.xlane.xlu0 %1385
      %v1387 = vrot.slane %v1386, 4
      %v1388 = vadd.f32 %v1386, %v1387
      %v1389 = vrot.slane %v1388, 2
      %v1390 = vadd.f32 %v1388, %v1389
      %v1391 = vrot.slane %v1390, 1
      %v1392 = vadd.f32 %v1390, %v1391
      %s1393 = vtos %v1392
      %p1394 = scmp.gt.f32.partialorder %s1393, %s945
      %s1395 = scalar_select %p1394, %s1376, %s1373
      %s1396 = scalar_select %p1394, %s1374, %s1376
      %s1397 = sadd.f32 %s1395, %s1396
      %s1398 = smul.f32 %s1397, 0.5
      %v1399 = vstv %s1398
      %vm1400 = vcmp.gt.f32.partialorder %v943, %v1399
      %v1401 = vsel %vm1400, 1, 0
      %v1402 = vcvt.s32.f32 %v1401
      %v1404 = vrot.slane %v1402, 4
      %v1406 = vsel %vm856, %v1404, 0.0
      %1407 = vadd.xlane.f32.xlu0 %v1406
      %v1408 = vpop.xlane.xlu0 %1407
      %v1409 = vrot.slane %v1408, 4
      %v1410 = vadd.f32 %v1408, %v1409
      %v1411 = vrot.slane %v1410, 2
      %v1412 = vadd.f32 %v1410, %v1411
      %v1413 = vrot.slane %v1412, 1
      %v1414 = vadd.f32 %v1412, %v1413
      %s1415 = vtos %v1414
      %p1416 = scmp.gt.f32.partialorder %s1415, %s945
      %s1417 = scalar_select %p1416, %s1398, %s1395
      %s1418 = scalar_select %p1416, %s1396, %s1398
      %s1419 = sadd.f32 %s1417, %s1418
      %s1420 = smul.f32 %s1419, 0.5
      %v1421 = vstv %s1420
      %vm1422 = vcmp.gt.f32.partialorder %v943, %v1421
      %v1423 = vsel %vm1422, 1, 0
      %v1424 = vcvt.s32.f32 %v1423
      %v1426 = vrot.slane %v1424, 4
      %v1428 = vsel %vm856, %v1426, 0.0
      %1429 = vadd.xlane.f32.xlu0 %v1428
      %v1430 = vpop.xlane.xlu0 %1429
      %v1431 = vrot.slane %v1430, 4
      %v1432 = vadd.f32 %v1430, %v1431
      %v1433 = vrot.slane %v1432, 2
      %v1434 = vadd.f32 %v1432, %v1433
      %v1435 = vrot.slane %v1434, 1
      %v1436 = vadd.f32 %v1434, %v1435
      %s1437 = vtos %v1436
      %p1438 = scmp.gt.f32.partialorder %s1437, %s945
      %s1439 = scalar_select %p1438, %s1420, %s1417
      %s1440 = scalar_select %p1438, %s1418, %s1420
      %s1441 = sadd.f32 %s1439, %s1440
      %s1442 = smul.f32 %s1441, 0.5
      %v1443 = vstv %s1442
      %vm1444 = vcmp.gt.f32.partialorder %v943, %v1443
      %v1445 = vsel %vm1444, 1, 0
      %v1446 = vcvt.s32.f32 %v1445
      %v1448 = vrot.slane %v1446, 4
      %v1450 = vsel %vm856, %v1448, 0.0
      %1451 = vadd.xlane.f32.xlu0 %v1450
      %v1452 = vpop.xlane.xlu0 %1451
      %v1453 = vrot.slane %v1452, 4
      %v1454 = vadd.f32 %v1452, %v1453
      %v1455 = vrot.slane %v1454, 2
      %v1456 = vadd.f32 %v1454, %v1455
      %v1457 = vrot.slane %v1456, 1
      %v1458 = vadd.f32 %v1456, %v1457
      %s1459 = vtos %v1458
      %p1460 = scmp.gt.f32.partialorder %s1459, %s945
      %s1461 = scalar_select %p1460, %s1442, %s1439
      %s1462 = scalar_select %p1460, %s1440, %s1442
      %s1463 = sadd.f32 %s1461, %s1462
      %s1464 = smul.f32 %s1463, 0.5
      %v1465 = vstv %s1464
      %vm1466 = vcmp.gt.f32.partialorder %v943, %v1465
      %v1467 = vsel %vm1466, 1, 0
      %v1468 = vcvt.s32.f32 %v1467
      %v1470 = vrot.slane %v1468, 4
      %v1472 = vsel %vm856, %v1470, 0.0
      %1473 = vadd.xlane.f32.xlu0 %v1472
      %v1474 = vpop.xlane.xlu0 %1473
      %v1475 = vrot.slane %v1474, 4
      %v1476 = vadd.f32 %v1474, %v1475
      %v1477 = vrot.slane %v1476, 2
      %v1478 = vadd.f32 %v1476, %v1477
      %v1479 = vrot.slane %v1478, 1
      %v1480 = vadd.f32 %v1478, %v1479
      %s1481 = vtos %v1480
      %p1482 = scmp.gt.f32.partialorder %s1481, %s945
      %s1483 = scalar_select %p1482, %s1464, %s1461
      %s1484 = scalar_select %p1482, %s1462, %s1464
      %s1485 = sadd.f32 %s1483, %s1484
      %s1486 = smul.f32 %s1485, 0.5
      %v1487 = vstv %s1486
      %vm1488 = vcmp.gt.f32.partialorder %v943, %v1487
      %v1489 = vsel %vm1488, 1, 0
      %v1490 = vcvt.s32.f32 %v1489
      %v1492 = vrot.slane %v1490, 4
      %v1494 = vsel %vm856, %v1492, 0.0
      %1495 = vadd.xlane.f32.xlu0 %v1494
      %v1496 = vpop.xlane.xlu0 %1495
      %v1497 = vrot.slane %v1496, 4
      %v1498 = vadd.f32 %v1496, %v1497
      %v1499 = vrot.slane %v1498, 2
      %v1500 = vadd.f32 %v1498, %v1499
      %v1501 = vrot.slane %v1500, 1
      %v1502 = vadd.f32 %v1500, %v1501
      %s1503 = vtos %v1502
      %p1504 = scmp.gt.f32.partialorder %s1503, %s945
      %s1505 = scalar_select %p1504, %s1486, %s1483
      %s1506 = scalar_select %p1504, %s1484, %s1486
      %s1507 = sadd.f32 %s1505, %s1506
      %s1508 = smul.f32 %s1507, 0.5
      %v1509 = vstv %s1508
      %vm1510 = vcmp.gt.f32.partialorder %v943, %v1509
      %v1511 = vsel %vm1510, 1, 0
      %v1512 = vcvt.s32.f32 %v1511
      %v1514 = vrot.slane %v1512, 4
      %v1516 = vsel %vm856, %v1514, 0.0
      %1517 = vadd.xlane.f32.xlu0 %v1516
      %v1518 = vpop.xlane.xlu0 %1517
      %v1519 = vrot.slane %v1518, 4
      %v1520 = vadd.f32 %v1518, %v1519
      %v1521 = vrot.slane %v1520, 2
      %v1522 = vadd.f32 %v1520, %v1521
      %v1523 = vrot.slane %v1522, 1
      %v1524 = vadd.f32 %v1522, %v1523
      %s1525 = vtos %v1524
      %p1526 = scmp.gt.f32.partialorder %s1525, %s945
      %s1527 = scalar_select %p1526, %s1508, %s1505
      %s1528 = scalar_select %p1526, %s1506, %s1508
      %s1529 = sadd.f32 %s1527, %s1528
      %s1530 = smul.f32 %s1529, 0.5
      %v1531 = vstv %s1530
      %vm1532 = vcmp.gt.f32.partialorder %v943, %v1531
      %v1533 = vsel %vm1532, 1, 0
      %v1534 = vcvt.s32.f32 %v1533
      %v1536 = vrot.slane %v1534, 4
      %v1538 = vsel %vm856, %v1536, 0.0
      %1539 = vadd.xlane.f32.xlu0 %v1538
      %v1540 = vpop.xlane.xlu0 %1539
      %v1541 = vrot.slane %v1540, 4
      %v1542 = vadd.f32 %v1540, %v1541
      %v1543 = vrot.slane %v1542, 2
      %v1544 = vadd.f32 %v1542, %v1543
      %v1545 = vrot.slane %v1544, 1
      %v1546 = vadd.f32 %v1544, %v1545
      %s1547 = vtos %v1546
      %p1548 = scmp.gt.f32.partialorder %s1547, %s945
      %s1549 = scalar_select %p1548, %s1530, %s1527
      %s1550 = scalar_select %p1548, %s1528, %s1530
      %s1551 = sadd.f32 %s1549, %s1550
      %s1552 = smul.f32 %s1551, 0.5
      %v1553 = vstv %s1552
      %vm1554 = vcmp.gt.f32.partialorder %v943, %v1553
      %v1555 = vsel %vm1554, 1, 0
      %v1556 = vcvt.s32.f32 %v1555
      %v1558 = vrot.slane %v1556, 4
      %v1560 = vsel %vm856, %v1558, 0.0
      %1561 = vadd.xlane.f32.xlu0 %v1560
      %v1562 = vpop.xlane.xlu0 %1561
      %v1563 = vrot.slane %v1562, 4
      %v1564 = vadd.f32 %v1562, %v1563
      %v1565 = vrot.slane %v1564, 2
      %v1566 = vadd.f32 %v1564, %v1565
      %v1567 = vrot.slane %v1566, 1
      %v1568 = vadd.f32 %v1566, %v1567
      %s1569 = vtos %v1568
      %p1570 = scmp.gt.f32.partialorder %s1569, %s945
      %s1571 = scalar_select %p1570, %s1552, %s1549
      %s1572 = scalar_select %p1570, %s1550, %s1552
      %s1573 = sadd.f32 %s1571, %s1572
      %s1574 = smul.f32 %s1573, 0.5
      %v1575 = vstv %s1574
      %vm1576 = vcmp.gt.f32.partialorder %v943, %v1575
      %v1577 = vsel %vm1576, 1, 0
      %v1578 = vcvt.s32.f32 %v1577
      %v1580 = vrot.slane %v1578, 4
      %v1582 = vsel %vm856, %v1580, 0.0
      %1583 = vadd.xlane.f32.xlu0 %v1582
      %v1584 = vpop.xlane.xlu0 %1583
      %v1585 = vrot.slane %v1584, 4
      %v1586 = vadd.f32 %v1584, %v1585
      %v1587 = vrot.slane %v1586, 2
      %v1588 = vadd.f32 %v1586, %v1587
      %v1589 = vrot.slane %v1588, 1
      %v1590 = vadd.f32 %v1588, %v1589
      %s1591 = vtos %v1590
      %p1592 = scmp.gt.f32.partialorder %s1591, %s945
      %s1593 = scalar_select %p1592, %s1574, %s1571
      %s1594 = scalar_select %p1592, %s1572, %s1574
      %s1595 = sadd.f32 %s1593, %s1594
      %s1596 = smul.f32 %s1595, 0.5
      %v1597 = vstv %s1596
      %vm1598 = vcmp.gt.f32.partialorder %v943, %v1597
      %v1599 = vsel %vm1598, 1, 0
      %v1600 = vcvt.s32.f32 %v1599
      %v1602 = vrot.slane %v1600, 4
      %v1604 = vsel %vm856, %v1602, 0.0
      %1605 = vadd.xlane.f32.xlu0 %v1604
      %v1606 = vpop.xlane.xlu0 %1605
      %v1607 = vrot.slane %v1606, 4
      %v1608 = vadd.f32 %v1606, %v1607
      %v1609 = vrot.slane %v1608, 2
      %v1610 = vadd.f32 %v1608, %v1609
      %v1611 = vrot.slane %v1610, 1
      %v1612 = vadd.f32 %v1610, %v1611
      %s1613 = vtos %v1612
      %p1614 = scmp.gt.f32.partialorder %s1613, %s945
      %s1615 = scalar_select %p1614, %s1594, %s1596
      %v1616 = vstv %s1615
      %vm1617 = vcmp.gt.f32.partialorder %v943, %v1616
      %v1618 = vsel %vm1617, 1, 0
      %v1619 = vcvt.s32.f32 %v1618
      %v1621 = vrot.slane %v1619, 4
      %v1623 = vsel %vm856, %v1621, 0.0
      %1624 = vadd.xlane.f32.xlu0 %v1623
      %v1625 = vpop.xlane.xlu0 %1624
      %v1626 = vrot.slane %v1625, 4
      %v1627 = vadd.f32 %v1625, %v1626
      %v1628 = vrot.slane %v1627, 2
      %v1629 = vadd.f32 %v1627, %v1628
      %v1630 = vrot.slane %v1629, 1
      %v1631 = vadd.f32 %v1629, %v1630
      %s1632 = vtos %v1631
      %v1633 = vsel %vm850, %v907, 0.0
      %v1634 = vsel %vm850, %v941, 0.0
      %v1635 = vsel %vm1617, %v943, 0.0
      %v1637 = vrot.slane %v1633, 4
      %v1640 = vrot.slane %v1634, 3
      %v1643 = vrot.slane %v1635, 2
      %v1645 = vsel %vm856, %v1637, %v1640
      %v1646 = vsel %vm888, %v1645, %v1643
      %v1647 = vsel %vm890, %v1646, 0.0
      %1648 = vadd.xlane.f32.xlu0 %v1647
      %v1649 = vpop.xlane.xlu0 %1648
      %s1650 = ssub.f32 %s945, %s1632
      %s1651 = smax.f32 %s1650, 0.0
      %s1652 = smul.f32 %s1651, %s1615
      %v1653 = vstv %s1652
      %v1654 = vadd.f32 %v1649, %v1653
      %vm1655 = vcmp.eq.s32.totalorder %v353, 0
      %v1656 = vlaneseq
      %v1657 = vshrl.u32 %v1656, 7
      %v1658 = vsub.s32 0, %v1657
      %v1659 = vrot.slane %v1649, %v1658
      %v1660 = vsel %vm1655, %v1659, 0.0
      %vm1661 = vcmp.eq.s32.totalorder %v353, 1
      %v1662 = vlaneseq
      %v1663 = vshrl.u32 %v1662, 7
      %v1664 = vsub.s32 1, %v1663
      %v1665 = vrot.slane %v1649, %v1664
      %v1666 = vsel %vm1661, %v1665, 0.0
      %v1667 = vadd.f32 %v1660, %v1666
      %vm1668 = vcmp.eq.s32.totalorder %v353, 2
      %v1669 = vlaneseq
      %v1670 = vshrl.u32 %v1669, 7
      %v1671 = vsub.s32 2, %v1670
      %v1672 = vrot.slane %v1654, %v1671
      %v1673 = vsel %vm1668, %v1672, 0.0
      %v1674 = vadd.f32 %v1667, %v1673
      %vm1675 = vcmp.eq.s32.totalorder %v353, 3
      %v1676 = vstv %s866
      %v1677 = vsel %vm1675, %v1676, 0.0
      %v1678 = vadd.f32 %v1674, %v1677
      %1679 = vst [vmem:[%s270] sm:$0xff] %v1678
      %p1680 = scmp.lt.s32.totalorder %s16, 1
      %s1681 = scalar_select %p1680, %s16, 1
      %s1682 = smul.addr %s1681, 8
      %s1683 = scalar_lea.vmem %s5, %s1682
      // Predicated region
      $region41: #{multibox_loss_pallas.1} parent=39 // pred_check
        %p1684 = pneg %p159
      $region42: #{multibox_loss_pallas.1} parent=39 // pred_check_branch
        %1686 = sbr.rel (%p1684) target = $region44
      $region43: #{multibox_loss_pallas.1} parent=39 // pred_region
        _
      $region44: #{multibox_loss_pallas.1} parent=39 // pred_fallthru
        _
    $region40: #{multibox_loss_pallas.1} parent=5 // pred_fallthru
      _
    %p1687 = scmp.le.s32.totalorder 2, %s11
    // Predicated region
    $region45: #{multibox_loss_pallas.1} parent=5 // pred_check
      %p1688 = pneg %p1687
    $region46: #{multibox_loss_pallas.1} parent=5 // pred_check_branch
      %1690 = sbr.rel (%p1688) target = $region48
    $region47: #{multibox_loss_pallas.1} parent=5 // pred_region
      %s1691 = ssub.s32 %s11, 2
      // Predicated region
      $region49: #{multibox_loss_pallas.1} parent=47 // pred_check
        %p1692 = pneg %p165
      $region50: #{multibox_loss_pallas.1} parent=47 // pred_check_branch
        %1694 = sbr.rel (%p1692) target = $region52
      $region51: #{multibox_loss_pallas.1} parent=47 // pred_region
        %p1695 = scmp.lt.s32.totalorder %s17, 1
        %s1696 = scalar_select %p1695, %s17, 1
        %s1697 = smul.addr %s1696, 8
        %s1698 = scalar_lea.vmem %s5, %s1697
      $region52: #{multibox_loss_pallas.1} parent=47 // pred_fallthru
        _
    $region48: #{multibox_loss_pallas.1} parent=5 // pred_fallthru
      _
  $region6: #{multibox_loss_pallas.1} parent=0 // loop_footer
    %s15 = sadd.s32 1, %s11
  $region7: #{multibox_loss_pallas.1} parent=0 // loop_footer_branch
    %10 = sbr.rel target = $region3
  $region8: #{multibox_loss_pallas.1} parent=0 // loop_exit
    _

</llo_original>
